<compile_context>
chip_gen: v7x
topology: tpu7x:2x2x1
jax: 0.10.0
libtpu: 0.0.40
codegen_flags: <defaults>
</compile_context>

<pallas_src>
import functools

import jax
import jax.numpy as jnp
from jax import lax
from jax.experimental import pallas as pl
from jax.experimental.pallas import tpu as pltpu


_MASK_VALUE = -1e30  # finite "minus infinity" for padded keys (avoids inf-inf NaNs)


def _device_info():
    """Return (vmem_capacity_bytes, has_bf16_eup) for the default device."""
    try:
        kind = jax.devices()[0].device_kind.lower()
    except Exception:
        kind = ""
    if "v7" in kind:
        return 64 * 1024 * 1024, True
    if "v6" in kind:
        return 128 * 1024 * 1024, True
    if "v5" in kind:  # v5e/v5p: 128 MiB VMEM, no bf16 VPU/EUP
        return 128 * 1024 * 1024, False
    # Unknown generation: be conservative on VMEM, keep exp in f32.
    return 64 * 1024 * 1024, False


def _pick_tile(n_pad, cap):
    """Largest multiple of 128 that divides n_pad and is <= cap (min 128)."""
    t = max(128, min(cap, n_pad) // 128 * 128)
    while n_pad % t != 0:
        t -= 128
    return t


def _pam_resident_kernel(f_ref, g_ref, h_ref, x_ref, o_ref, *, n_valid, exp_dtype):
    """One (TQ, C) query tile against the full resident g/h of a batch element.

    f_ref: (TQ, C)  bf16   query-major f projection tile
    g_ref: (N,  C)  bf16   key-major   g projection (whole batch element)
    h_ref: (C,  N)  bf16   h projection (whole batch element)
    x_ref: (C, TQ)  f32    residual tile
    o_ref: (C, TQ)         output tile
    """
    # Key-major logits: att[k, q] = sum_c g[k, c] * f[q, c]  (A @ B^T form).
    att = lax.dot_general(
        g_ref[...], f_ref[...],
        dimension_numbers=(((1,), (1,)), ((), ())),
        preferred_element_type=jnp.float32,
    )  # (N, TQ) f32
    n_pad = att.shape[0]
    if n_valid < n_pad:  # static: only emitted when the wrapper padded N
        key_ids = lax.broadcasted_iota(jnp.int32, att.shape, 0)
        att = jnp.where(key_ids < n_valid, att, _MASK_VALUE)

    # Exact softmax over keys (axis 0); normalization deferred to the output.
    m = jnp.max(att, axis=0, keepdims=True)                      # (1, TQ) f32
    p = jnp.exp((att - m).astype(exp_dtype))                     # (N, TQ)
    l = jnp.sum(p, axis=0, keepdims=True, dtype=jnp.float32)     # (1, TQ) f32

    # out[c, q] = sum_k h[c, k] * p[k, q]   (standard matmul, no transpose).
    out = lax.dot_general(
        h_ref[...], p.astype(h_ref.dtype),
        dimension_numbers=(((1,), (0,)), ((), ())),
        preferred_element_type=jnp.float32,
    )  # (C, TQ) f32

    inv = pl.reciprocal(l, approx=True)                          # (1, TQ), EUP
    o_ref[...] = (out * inv + x_ref[...].astype(jnp.float32)).astype(o_ref.dtype)


def _pam_flash_kernel(f_ref, g_ref, h_ref, x_ref, o_ref, m_sc, l_sc, acc_sc,
                      *, n_valid, n_pad, tk, exp_dtype):
    """Key-tiled online-softmax path: grid (B, NQ, NK), key axis innermost.

    f_ref: (TQ, C) bf16 ; g_ref: (TK, C) bf16 ; h_ref: (C, TK) bf16
    x_ref/o_ref: (C, TQ) ; m_sc/l_sc: (1, TQ) f32 ; acc_sc: (C, TQ) f32
    """
    k_step = pl.program_id(2)

    @pl.when(k_step == 0)
    def _():
        m_sc[...] = jnp.full_like(m_sc, -jnp.inf)
        l_sc[...] = jnp.zeros_like(l_sc)
        acc_sc[...] = jnp.zeros_like(acc_sc)

    s = lax.dot_general(
        g_ref[...], f_ref[...],
        dimension_numbers=(((1,), (1,)), ((), ())),
        preferred_element_type=jnp.float32,
    )  # (TK, TQ) f32
    if n_valid < n_pad:  # static: only emitted when the wrapper padded N
        key_ids = k_step * tk + lax.broadcasted_iota(jnp.int32, s.shape, 0)
        s = jnp.where(key_ids < n_valid, s, _MASK_VALUE)

    m_prev = m_sc[...]                                             # (1, TQ)
    m_new = jnp.maximum(m_prev, jnp.max(s, axis=0, keepdims=True))
    alpha = jnp.exp(m_prev - m_new)                                # (1, TQ) f32
    p = jnp.exp((s - m_new).astype(exp_dtype))                     # (TK, TQ)
    l_sc[...] = alpha * l_sc[...] + jnp.sum(p, axis=0, keepdims=True,
                                            dtype=jnp.float32)
    pv = lax.dot_general(
        h_ref[...], p.astype(h_ref.dtype),
        dimension_numbers=(((1,), (0,)), ((), ())),
        preferred_element_type=jnp.float32,
    )  # (C, TQ) f32
    acc_sc[...] = alpha * acc_sc[...] + pv
    m_sc[...] = m_new

    @pl.when(k_step == pl.num_programs(2) - 1)
    def _():
        inv = pl.reciprocal(l_sc[...], approx=True)                # (1, TQ)
        o_ref[...] = (acc_sc[...] * inv
                      + x_ref[...].astype(jnp.float32)).astype(o_ref.dtype)


def position_attention_module(x, wf, bf, wg, bg, wh, bh, *,
                              tq=None, tk=None, key_tiled=None, exp_dtype=None):
    """PositionAttentionModule forward.  x: (B, C, H, W) f32 -> (B, C, H, W)."""
    B, C, H, W = x.shape
    N = H * W
    n_pad = -(-N // 128) * 128  # pad N to a lane-aligned multiple of 128

    vmem_cap, bf16_eup = _device_info()
    if exp_dtype is None:
        exp_dtype = jnp.bfloat16 if bf16_eup else jnp.float32
    vmem_limit = min(int(vmem_cap * 0.75), 96 * 1024 * 1024)
    budget = int(vmem_limit * 0.8)
    exp_bytes = jnp.dtype(exp_dtype).itemsize

    xf = x.reshape(B, C, N)
    if n_pad != N:
        xf = jnp.pad(xf, ((0, 0), (0, 0), (0, n_pad - N)))

    # 1x1 convs hoisted to XLA (computed once per batch element).  f and g are
    # produced in (B, N, C) layout so the in-kernel matmuls need no transposes.
    f_nc = jnp.einsum("oc,bcn->bno", wf, xf) + bf[None, None, :]
    g_nc = jnp.einsum("oc,bcn->bno", wg, xf) + bg[None, None, :]
    h_cn = jnp.einsum("oc,bcn->bon", wh, xf) + bh[None, :, None]
    # bf16 MXU operands, f32 accumulation inside the kernel.
    # TODO(synk): optional int8 g/h for v6e's int MXU path (accuracy-budget call).
    f_nc = f_nc.astype(jnp.bfloat16)
    g_nc = g_nc.astype(jnp.bfloat16)
    h_cn = h_cn.astype(jnp.bfloat16)

    def resident_bytes(t):
        gh = 2 * C * n_pad * 2                       # g + h, single-buffered
        tiles = 2 * t * C * 2 + 2 * 2 * C * t * 4    # f (2-buf) + x/o (2-buf)
        temps = t * n_pad * (4 + exp_bytes) + C * t * 4
        return gh + tiles + temps

    if tq is None:
        cap = 1024 if vmem_cap >= 128 * 1024 * 1024 else 256
        tq = _pick_tile(n_pad, cap)
        while key_tiled is not True and tq > 128 and resident_bytes(tq) > budget:
            tq = _pick_tile(n_pad, tq - 128)
    assert tq % 128 == 0 and n_pad % tq == 0, "tq must be a 128-multiple dividing padded N"
    if key_tiled is None:
        key_tiled = resident_bytes(tq) > budget
    if tk is None:
        tk = _pick_tile(n_pad, 512)
    assert tk % 128 == 0 and n_pad % tk == 0, "tk must be a 128-multiple dividing padded N"

    grid_q = n_pad // tq
    # On v7x (2 TensorCores) prefer splitting on batch so each core keeps its own
    # resident g/h; the query axis only needs to stay parallel when B == 1.
    q_sem = "arbitrary" if B >= 2 else "parallel"
    out_shape = jax.ShapeDtypeStruct((B, C, n_pad), x.dtype)

    if not key_tiled:
        kernel = functools.partial(_pam_resident_kernel, n_valid=N,
                                   exp_dtype=exp_dtype)
        cost = pl.CostEstimate(
            flops=4 * B * C * n_pad * n_pad,
            transcendentals=B * n_pad * n_pad,
            bytes_accessed=B * C * n_pad * (2 + 2 + 2 + 4 + 4),
        )

        def run(single_buffer_gh):
            gh_kw = dict(pipeline_mode=pl.Buffered(1)) if single_buffer_gh else {}
            return pl.pallas_call(
                kernel,
                out_shape=out_shape,
                grid_spec=pltpu.PrefetchScalarGridSpec(
                    num_scalar_prefetch=0,
                    grid=(B, grid_q),
                    in_specs=[
                        pl.BlockSpec((None, tq, C), lambda b, q: (b, q, 0)),
                        pl.BlockSpec((None, n_pad, C), lambda b, q: (b, 0, 0), **gh_kw),
                        pl.BlockSpec((None, C, n_pad), lambda b, q: (b, 0, 0), **gh_kw),
                        pl.BlockSpec((None, C, tq), lambda b, q: (b, 0, q)),
                    ],
                    out_specs=pl.BlockSpec((None, C, tq), lambda b, q: (b, 0, q)),
                ),
                compiler_params=pltpu.CompilerParams(
                    dimension_semantics=("parallel", q_sem),
                    vmem_limit_bytes=vmem_limit,
                ),
                cost_estimate=cost,
            )(f_nc, g_nc, h_cn, xf)

        try:
            # g/h index_map is constant over the query axis -> single buffer is
            # enough; halves the dominant resident-VMEM term.
            out = run(True)
        except Exception:
            # Fallback if this jax version rejects single-buffered pipeline_mode
            # (a VMEM-only, not a correctness/perf, regression).
            out = run(False)
    else:
        grid_k = n_pad // tk
        kernel = functools.partial(_pam_flash_kernel, n_valid=N, n_pad=n_pad,
                                   tk=tk, exp_dtype=exp_dtype)
        cost = pl.CostEstimate(
            flops=4 * B * C * n_pad * n_pad,
            transcendentals=B * n_pad * n_pad,
            bytes_accessed=B * C * n_pad * (2 + 4 + 4)
            + B * grid_q * C * n_pad * (2 + 2),
        )
        out = pl.pallas_call(
            kernel,
            out_shape=out_shape,
            grid_spec=pltpu.PrefetchScalarGridSpec(
                num_scalar_prefetch=0,
                grid=(B, grid_q, grid_k),
                in_specs=[
                    pl.BlockSpec((None, tq, C), lambda b, q, k: (b, q, 0)),
                    pl.BlockSpec((None, tk, C), lambda b, q, k: (b, k, 0)),
                    pl.BlockSpec((None, C, tk), lambda b, q, k: (b, 0, k)),
                    pl.BlockSpec((None, C, tq), lambda b, q, k: (b, 0, q)),
                ],
                out_specs=pl.BlockSpec((None, C, tq), lambda b, q, k: (b, 0, q)),
                scratch_shapes=[
                    pltpu.VMEM((1, tq), jnp.float32),   # running max m
                    pltpu.VMEM((1, tq), jnp.float32),   # running sum l
                    pltpu.VMEM((C, tq), jnp.float32),   # output accumulator
                ],
            ),
            compiler_params=pltpu.CompilerParams(
                dimension_semantics=("parallel", q_sem, "arbitrary"),
                vmem_limit_bytes=vmem_limit,
            ),
            cost_estimate=cost,
        )(f_nc, g_nc, h_cn, xf)

    if n_pad != N:
        out = out[:, :, :N]
    return out.reshape(B, C, H, W)


def reference_pam(x, wf, bf, wg, bg, wh, bh):
    """Plain-JAX f32 reference mirroring the PyTorch forward exactly."""
    B, C, H, W = x.shape
    N = H * W
    xf = x.reshape(B, C, N)
    f = jnp.einsum("oc,bcn->bon", wf, xf) + bf[None, :, None]
    g = jnp.einsum("oc,bcn->bon", wg, xf) + bg[None, :, None]
    h = jnp.einsum("oc,bcn->bon", wh, xf) + bh[None, :, None]
    att = jnp.einsum("bcn,bcm->bnm", f, g)            # f^T @ g
    att = jax.nn.softmax(att, axis=-1)
    out = jnp.einsum("bcm,bnm->bcn", h, att)          # h @ att^T
    return out.reshape(B, C, H, W) + x


if __name__ == "__main__":
    def make_inputs(key, B, C, H, W):
        kx, kwf, kbf, kwg, kbg, kwh, kbh = jax.random.split(key, 7)
        scale = 1.0 / jnp.sqrt(C)
        x = jax.random.normal(kx, (B, C, H, W), dtype=jnp.float32)
        wf = jax.random.normal(kwf, (C, C), dtype=jnp.float32) * scale
        bf = jax.random.normal(kbf, (C,), dtype=jnp.float32) * scale
        wg = jax.random.normal(kwg, (C, C), dtype=jnp.float32) * scale
        bg = jax.random.normal(kbg, (C,), dtype=jnp.float32) * scale
        wh = jax.random.normal(kwh, (C, C), dtype=jnp.float32) * scale
        bh = jax.random.normal(kbh, (C,), dtype=jnp.float32) * scale
        return x, wf, bf, wg, bg, wh, bh

    def check(out, ref, name):
        out = jax.block_until_ready(out)
        assert out.shape == ref.shape, name
        # bf16 MXU operands (and bf16 exp on v6e/v7x) + approx reciprocal.
        assert jnp.allclose(out, ref, rtol=2e-2, atol=5e-2), (
            f"{name}: max abs err {jnp.max(jnp.abs(out - ref))}")

    key = jax.random.PRNGKey(0)
    k1, k2 = jax.random.split(key)

    # Case 1: N = 256 (divisible by 128).  Exercises the resident-g/h path with
    # a multi-tile query grid, and the key-tiled online-softmax path.
    args = make_inputs(k1, 2, 4, 16, 16)
    ref = reference_pam(*args)
    check(position_attention_module(*args, tq=128, key_tiled=False), ref,
          "resident path")
    check(position_attention_module(*args, tq=128, tk=128, key_tiled=True), ref,
          "key-tiled path")

    # Case 2: N = 100 -> zero-padded to 128 with masked keys; auto settings.
    args2 = make_inputs(k2, 1, 4, 10, 10)
    ref2 = reference_pam(*args2)
    check(position_attention_module(*args2), ref2, "padded resident path")
    check(position_attention_module(*args2, tq=128, tk=128, key_tiled=True),
          ref2, "padded key-tiled path")

    print("KERNEL_OK")
</pallas_src>

<mosaic_0001>
module attributes {stable_mosaic.version = 11 : i64} {
  func.func @_pam_resident_kernel(%arg0: i32, %arg1: i32, %arg2: memref<1x128x4xbf16, #tpu.memory_space<vmem>>, %arg3: memref<1x256x4xbf16, #tpu.memory_space<vmem>>, %arg4: memref<1x4x256xbf16, #tpu.memory_space<vmem>>, %arg5: memref<1x4x128xf32, #tpu.memory_space<vmem>>, %arg6: memref<1x4x128xf32, #tpu.memory_space<vmem>>) attributes {dimension_semantics = [#tpu.dimension_semantics<parallel>, #tpu.dimension_semantics<arbitrary>], iteration_bounds = array<i64: 2, 2>, scalar_prefetch = 0 : i64, scratch_operands = 0 : i64, tpu.core_type = #tpu.core_type<tc>, window_params = [{transform_indices = @transform_0, window_bounds = array<i64: 1, 128, 4>}, {pipeline_mode = #tpu.pipeline_mode<synchronous>, transform_indices = @transform_1, window_bounds = array<i64: 1, 256, 4>}, {pipeline_mode = #tpu.pipeline_mode<synchronous>, transform_indices = @transform_2, window_bounds = array<i64: 1, 4, 256>}, {transform_indices = @transform_3, window_bounds = array<i64: 1, 4, 128>}, {transform_indices = @transform_4, window_bounds = array<i64: 1, 4, 128>}]} {
    %c0 = arith.constant 0 : index
    %c0_0 = arith.constant 0 : index
    %c0_1 = arith.constant 0 : index
    %0 = vector.load %arg3[%c0, %c0_0, %c0_1] : memref<1x256x4xbf16, #tpu.memory_space<vmem>>, vector<1x256x4xbf16>
    %1 = vector.shape_cast %0 : vector<1x256x4xbf16> to vector<256x4xbf16>
    %c0_2 = arith.constant 0 : index
    %c0_3 = arith.constant 0 : index
    %c0_4 = arith.constant 0 : index
    %2 = vector.load %arg2[%c0_2, %c0_3, %c0_4] : memref<1x128x4xbf16, #tpu.memory_space<vmem>>, vector<1x128x4xbf16>
    %3 = vector.shape_cast %2 : vector<1x128x4xbf16> to vector<128x4xbf16>
    %cst = arith.constant dense<0.000000e+00> : vector<256x128xf32>
    %4 = tpu.matmul %1, %3, %cst {dimension_numbers = #tpu.dot_dimension_numbers<[1], [1], [0], [0], [0, 0, 1, 0], [], []>} : vector<256x4xbf16>, vector<128x4xbf16>, vector<256x128xf32> -> vector<256x128xf32>
    %cst_5 = arith.constant dense<0xFF800000> : vector<128xf32>
    %5 = vector.multi_reduction <maximumf>, %4, %cst_5 [0] : vector<256x128xf32> to vector<128xf32>
    %6 = vector.shape_cast %5 : vector<128xf32> to vector<1x128xf32>
    %7 = vector.broadcast %6 : vector<1x128xf32> to vector<256x128xf32>
    %8 = arith.subf %4, %7 : vector<256x128xf32>
    %9 = math.exp %8 : vector<256x128xf32>
    %cst_6 = arith.constant dense<0.000000e+00> : vector<128xf32>
    %10 = vector.multi_reduction <add>, %9, %cst_6 [0] : vector<256x128xf32> to vector<128xf32>
    %11 = vector.shape_cast %10 : vector<128xf32> to vector<1x128xf32>
    %c0_7 = arith.constant 0 : index
    %c0_8 = arith.constant 0 : index
    %c0_9 = arith.constant 0 : index
    %12 = vector.load %arg4[%c0_7, %c0_8, %c0_9] : memref<1x4x256xbf16, #tpu.memory_space<vmem>>, vector<1x4x256xbf16>
    %13 = vector.shape_cast %12 : vector<1x4x256xbf16> to vector<4x256xbf16>
    %14 = arith.truncf %9 : vector<256x128xf32> to vector<256x128xbf16>
    %cst_10 = arith.constant dense<0.000000e+00> : vector<4x128xf32>
    %15 = tpu.matmul %13, %14, %cst_10 {dimension_numbers = #tpu.dot_dimension_numbers<[1], [0], [0], [1], [0, 0, 1, 1], [], []>} : vector<4x256xbf16>, vector<256x128xbf16>, vector<4x128xf32> -> vector<4x128xf32>
    %16 = tpu.reciprocal %11 {approx = true} : vector<1x128xf32> -> vector<1x128xf32>
    %17 = vector.broadcast %16 : vector<1x128xf32> to vector<4x128xf32>
    %18 = arith.mulf %15, %17 : vector<4x128xf32>
    %c0_11 = arith.constant 0 : index
    %c0_12 = arith.constant 0 : index
    %c0_13 = arith.constant 0 : index
    %19 = vector.load %arg5[%c0_11, %c0_12, %c0_13] : memref<1x4x128xf32, #tpu.memory_space<vmem>>, vector<1x4x128xf32>
    %20 = vector.shape_cast %19 : vector<1x4x128xf32> to vector<4x128xf32>
    %21 = arith.addf %18, %20 : vector<4x128xf32>
    %c0_14 = arith.constant 0 : index
    %c0_15 = arith.constant 0 : index
    %c0_16 = arith.constant 0 : index
    %22 = vector.load %arg6[%c0_14, %c0_15, %c0_16] : memref<1x4x128xf32, #tpu.memory_space<vmem>>, vector<1x4x128xf32>
    %23 = vector.shape_cast %22 : vector<1x4x128xf32> to vector<4x128xf32>
    %24 = vector.shape_cast %21 : vector<4x128xf32> to vector<1x4x128xf32>
    tpu.vector_store %arg6[%c0_14, %c0_15, %c0_16], %24 {strides = array<i32>} : memref<1x4x128xf32, #tpu.memory_space<vmem>>, vector<1x4x128xf32>,
    return
  }
  func.func @transform_0(%arg0: i32, %arg1: i32) -> (i32, i32, i32) {
    %c0_i32 = arith.constant 0 : i32
    %c0_i32_0 = arith.constant 0 : i32
    return %arg0, %arg1, %c0_i32 : i32, i32, i32
  }
  func.func @transform_1(%arg0: i32, %arg1: i32) -> (i32, i32, i32) {
    %c0_i32 = arith.constant 0 : i32
    %c0_i32_0 = arith.constant 0 : i32
    %c0_i32_1 = arith.constant 0 : i32
    return %arg0, %c0_i32, %c0_i32_0 : i32, i32, i32
  }
  func.func @transform_2(%arg0: i32, %arg1: i32) -> (i32, i32, i32) {
    %c0_i32 = arith.constant 0 : i32
    %c0_i32_0 = arith.constant 0 : i32
    %c0_i32_1 = arith.constant 0 : i32
    return %arg0, %c0_i32, %c0_i32_0 : i32, i32, i32
  }
  func.func @transform_3(%arg0: i32, %arg1: i32) -> (i32, i32, i32) {
    %c0_i32 = arith.constant 0 : i32
    %c0_i32_0 = arith.constant 0 : i32
    return %arg0, %c0_i32, %arg1 : i32, i32, i32
  }
  func.func @transform_4(%arg0: i32, %arg1: i32) -> (i32, i32, i32) {
    %c0_i32 = arith.constant 0 : i32
    %c0_i32_0 = arith.constant 0 : i32
    return %arg0, %c0_i32, %arg1 : i32, i32, i32
  }
}

module attributes {stable_mosaic.version = 11 : i64} {
  func.func @_pam_resident_kernel(%arg0: i32, %arg1: i32, %arg2: memref<1x128x4xbf16, #tpu.memory_space<vmem>>, %arg3: memref<1x256x4xbf16, #tpu.memory_space<vmem>>, %arg4: memref<1x4x256xbf16, #tpu.memory_space<vmem>>, %arg5: memref<1x4x128xf32, #tpu.memory_space<vmem>>, %arg6: memref<1x4x128xf32, #tpu.memory_space<vmem>>) attributes {dimension_semantics = [#tpu.dimension_semantics<parallel>, #tpu.dimension_semantics<arbitrary>], iteration_bounds = array<i64: 2, 2>, scalar_prefetch = 0 : i64, scratch_operands = 0 : i64, tpu.core_type = #tpu.core_type<tc>, window_params = [{transform_indices = @transform_0, window_bounds = array<i64: 1, 128, 4>}, {transform_indices = @transform_1, window_bounds = array<i64: 1, 256, 4>}, {transform_indices = @transform_2, window_bounds = array<i64: 1, 4, 256>}, {transform_indices = @transform_3, window_bounds = array<i64: 1, 4, 128>}, {transform_indices = @transform_4, window_bounds = array<i64: 1, 4, 128>}]} {
    %c0 = arith.constant 0 : index
    %c0_0 = arith.constant 0 : index
    %c0_1 = arith.constant 0 : index
    %0 = vector.load %arg3[%c0, %c0_0, %c0_1] : memref<1x256x4xbf16, #tpu.memory_space<vmem>>, vector<1x256x4xbf16>
    %1 = vector.shape_cast %0 : vector<1x256x4xbf16> to vector<256x4xbf16>
    %c0_2 = arith.constant 0 : index
    %c0_3 = arith.constant 0 : index
    %c0_4 = arith.constant 0 : index
    %2 = vector.load %arg2[%c0_2, %c0_3, %c0_4] : memref<1x128x4xbf16, #tpu.memory_space<vmem>>, vector<1x128x4xbf16>
    %3 = vector.shape_cast %2 : vector<1x128x4xbf16> to vector<128x4xbf16>
    %cst = arith.constant dense<0.000000e+00> : vector<256x128xf32>
    %4 = tpu.matmul %1, %3, %cst {dimension_numbers = #tpu.dot_dimension_numbers<[1], [1], [0], [0], [0, 0, 1, 0], [], []>} : vector<256x4xbf16>, vector<128x4xbf16>, vector<256x128xf32> -> vector<256x128xf32>
    %cst_5 = arith.constant dense<0xFF800000> : vector<128xf32>
    %5 = vector.multi_reduction <maximumf>, %4, %cst_5 [0] : vector<256x128xf32> to vector<128xf32>
    %6 = vector.shape_cast %5 : vector<128xf32> to vector<1x128xf32>
    %7 = vector.broadcast %6 : vector<1x128xf32> to vector<256x128xf32>
    %8 = arith.subf %4, %7 : vector<256x128xf32>
    %9 = math.exp %8 : vector<256x128xf32>
    %cst_6 = arith.constant dense<0.000000e+00> : vector<128xf32>
    %10 = vector.multi_reduction <add>, %9, %cst_6 [0] : vector<256x128xf32> to vector<128xf32>
    %11 = vector.shape_cast %10 : vector<128xf32> to vector<1x128xf32>
    %c0_7 = arith.constant 0 : index
    %c0_8 = arith.constant 0 : index
    %c0_9 = arith.constant 0 : index
    %12 = vector.load %arg4[%c0_7, %c0_8, %c0_9] : memref<1x4x256xbf16, #tpu.memory_space<vmem>>, vector<1x4x256xbf16>
    %13 = vector.shape_cast %12 : vector<1x4x256xbf16> to vector<4x256xbf16>
    %14 = arith.truncf %9 : vector<256x128xf32> to vector<256x128xbf16>
    %cst_10 = arith.constant dense<0.000000e+00> : vector<4x128xf32>
    %15 = tpu.matmul %13, %14, %cst_10 {dimension_numbers = #tpu.dot_dimension_numbers<[1], [0], [0], [1], [0, 0, 1, 1], [], []>} : vector<4x256xbf16>, vector<256x128xbf16>, vector<4x128xf32> -> vector<4x128xf32>
    %16 = tpu.reciprocal %11 {approx = true} : vector<1x128xf32> -> vector<1x128xf32>
    %17 = vector.broadcast %16 : vector<1x128xf32> to vector<4x128xf32>
    %18 = arith.mulf %15, %17 : vector<4x128xf32>
    %c0_11 = arith.constant 0 : index
    %c0_12 = arith.constant 0 : index
    %c0_13 = arith.constant 0 : index
    %19 = vector.load %arg5[%c0_11, %c0_12, %c0_13] : memref<1x4x128xf32, #tpu.memory_space<vmem>>, vector<1x4x128xf32>
    %20 = vector.shape_cast %19 : vector<1x4x128xf32> to vector<4x128xf32>
    %21 = arith.addf %18, %20 : vector<4x128xf32>
    %c0_14 = arith.constant 0 : index
    %c0_15 = arith.constant 0 : index
    %c0_16 = arith.constant 0 : index
    %22 = vector.load %arg6[%c0_14, %c0_15, %c0_16] : memref<1x4x128xf32, #tpu.memory_space<vmem>>, vector<1x4x128xf32>
    %23 = vector.shape_cast %22 : vector<1x4x128xf32> to vector<4x128xf32>
    %24 = vector.shape_cast %21 : vector<4x128xf32> to vector<1x4x128xf32>
    tpu.vector_store %arg6[%c0_14, %c0_15, %c0_16], %24 {strides = array<i32>} : memref<1x4x128xf32, #tpu.memory_space<vmem>>, vector<1x4x128xf32>,
    return
  }
  func.func @transform_0(%arg0: i32, %arg1: i32) -> (i32, i32, i32) {
    %c0_i32 = arith.constant 0 : i32
    %c0_i32_0 = arith.constant 0 : i32
    return %arg0, %arg1, %c0_i32 : i32, i32, i32
  }
  func.func @transform_1(%arg0: i32, %arg1: i32) -> (i32, i32, i32) {
    %c0_i32 = arith.constant 0 : i32
    %c0_i32_0 = arith.constant 0 : i32
    %c0_i32_1 = arith.constant 0 : i32
    return %arg0, %c0_i32, %c0_i32_0 : i32, i32, i32
  }
  func.func @transform_2(%arg0: i32, %arg1: i32) -> (i32, i32, i32) {
    %c0_i32 = arith.constant 0 : i32
    %c0_i32_0 = arith.constant 0 : i32
    %c0_i32_1 = arith.constant 0 : i32
    return %arg0, %c0_i32, %c0_i32_0 : i32, i32, i32
  }
  func.func @transform_3(%arg0: i32, %arg1: i32) -> (i32, i32, i32) {
    %c0_i32 = arith.constant 0 : i32
    %c0_i32_0 = arith.constant 0 : i32
    return %arg0, %c0_i32, %arg1 : i32, i32, i32
  }
  func.func @transform_4(%arg0: i32, %arg1: i32) -> (i32, i32, i32) {
    %c0_i32 = arith.constant 0 : i32
    %c0_i32_0 = arith.constant 0 : i32
    return %arg0, %c0_i32, %arg1 : i32, i32, i32
  }
}

</mosaic_0001>

<llo_original>
// kernel: tpu_custom_call.1
$region0: #{tpu_custom_call.1}
  #allocation0 [shape = 'u32[]', space=smem, size = 0x4, offset = 0x4, fixed_abs, tag = 'smem constant byte address 0x4 - core index']
  #allocation1 [shape = 'u32[144,128]{1,0:T(1,128)}', space=vmem, size = 0x12000, scoped, tag = 'internal scratch']
  %s0 = inlined_call_operand.vmem [shape: bf16[2,256,4], index: 0, kind: input, shape index: {}]
  %s1 = inlined_call_operand.vmem [shape: bf16[2,256,4], index: 1, kind: input, shape index: {}]
  %s2 = inlined_call_operand.vmem [shape: bf16[2,4,256], index: 2, kind: input, shape index: {}]
  %s3 = inlined_call_operand.vmem [shape: f32[2,4,256], index: 3, kind: input, shape index: {}]
  %s4 = inlined_call_operand.hbm [shape: f32[2,4,256], index: 4, kind: output, shape index: {}]
  %s5 = sld [smem:[#allocation0]]
  $region49: #{tpu_custom_call.1} parent=0
    _
  %s7 = ssub.s32 1, %s5
  %s8 = scalar_select 0, %s7, %s5
  $region1: #{tpu_custom_call.1} parent=0
    #allocation2 [shape = 'u8[4096]{0}', space=vmem, size = 0x1000, scoped, tag = 'output window, operand 0']
    #allocation3 [shape = 's32[2]{0}', space=sflag, size = 0x8, scoped, tag = 'scoped memory for tpu_custom_call.1']
    %9 = vsyncpa [#allocation3], 0
    %s10 = scalar_lea.sflag [#allocation3], 1
    %11 = vsyncpa %s10, 0
    loop: start=0, step=1, limit=6
    $region2: #{tpu_custom_call.1} parent=1 // loop_pre_header
      _
    $region3: #{tpu_custom_call.1} parent=1 // loop_header
      %s13 = sphi 0, %s17
      %p14 = scmp.ge.s32.totalorder %s13, 6
      %s20 = sphi 0, %s32
      %s21 = sphi 0, %s28
      %s22 = sphi 0, %s20
      %s23 = sphi 0, %s21
      %s24 = sphi 0, %s22
      %s25 = sphi 0, %s23
      %s37 = sphi 0, %s39
      %s40 = sphi 0, %s37
      %s41 = sphi 0, %s40
      %s57 = sphi 0, %s41
      %s63 = sphi 0, %s65
      %s66 = sphi 0, %s63
      %s67 = sphi 0, %s66
      %s83 = sphi 0, %s67
      %s89 = sphi 0, %s91
      %s92 = sphi 0, %s89
      %s93 = sphi 0, %s92
      %s109 = sphi 0, %s93
      %s117 = sphi 0, %s119
      %s120 = sphi 0, %s117
      %s121 = sphi 0, %s120
      %s137 = sphi 0, %s121
      %s145 = sphi 0, %s147
      %s148 = sphi 0, %s145
      %s149 = sphi 0, %s148
      %s165 = sphi 0, %s149
    $region4: #{tpu_custom_call.1} parent=1 // loop_header_branch
      %16 = sbr.rel (%p14) target = $region8
    $region5: #{tpu_custom_call.1} parent=1 // loop_body
      %s18 = ssub.s32 %s13, 1
      %s19 = ssub.s32 %s13, 2
      %s26 = sadd.s32 1, %s21
      %p27 = scmp.ge.s32.totalorder %s26, 2
      %s28 = scalar_select %p27, 0, %s26
      %s29 = sadd.s32 1, %s20
      %s30 = scalar_select %p27, %s29, %s20
      %p31 = scmp.ge.s32.totalorder %s30, 2
      %s32 = scalar_select %p31, 0, %s30
      %s33 = ssub.s32 %s20, %s32
      %s34 = ssub.s32 %s21, %s28
      %s35 = sor.u32 %s33, %s34
      %p36 = scmp.eq.s32.totalorder %s35, 0
      %s38 = sadd.s32 %s37, 1
      %s39 = scalar_select %p36, %s37, %s38
      %p42 = pneg %p36
      %p43 = scmp.eq.s32.totalorder %s13, 3
      %p44 = por %p42, %p43
      %p45 = scmp.ne.s32.totalorder %s37, %s40
      %p46 = scmp.eq.s32.totalorder %s13, 0
      %p47 = por %p45, %p46
      %p48 = scmp.ne.s32.totalorder %s37, %s40
      %p49 = scmp.eq.s32.totalorder %s18, 3
      %p50 = por %p48, %p49
      %p51 = scmp.ne.s32.totalorder %s40, %s41
      %p52 = scmp.eq.s32.totalorder %s18, 0
      %p53 = por %p51, %p52
      %p54 = scmp.ne.s32.totalorder %s40, %s41
      %p55 = scmp.eq.s32.totalorder %s19, 3
      %p56 = por %p54, %p55
      %p58 = scmp.ne.s32.totalorder %s41, %s57
      %p59 = scmp.eq.s32.totalorder %s19, 0
      %p60 = por %p58, %p59
      %s61 = ssub.s32 %s20, %s32
      %p62 = scmp.eq.s32.totalorder %s61, 0
      %s64 = sadd.s32 %s63, 1
      %s65 = scalar_select %p62, %s63, %s64
      %p68 = pneg %p62
      %p69 = scmp.eq.s32.totalorder %s13, 3
      %p70 = por %p68, %p69
      %p71 = scmp.ne.s32.totalorder %s63, %s66
      %p72 = scmp.eq.s32.totalorder %s13, 0
      %p73 = por %p71, %p72
      %p74 = scmp.ne.s32.totalorder %s63, %s66
      %p75 = scmp.eq.s32.totalorder %s18, 3
      %p76 = por %p74, %p75
      %p77 = scmp.ne.s32.totalorder %s66, %s67
      %p78 = scmp.eq.s32.totalorder %s18, 0
      %p79 = por %p77, %p78
      %p80 = scmp.ne.s32.totalorder %s66, %s67
      %p81 = scmp.eq.s32.totalorder %s19, 3
      %p82 = por %p80, %p81
      %p84 = scmp.ne.s32.totalorder %s67, %s83
      %p85 = scmp.eq.s32.totalorder %s19, 0
      %p86 = por %p84, %p85
      %s87 = ssub.s32 %s20, %s32
      %p88 = scmp.eq.s32.totalorder %s87, 0
      %s90 = sadd.s32 %s89, 1
      %s91 = scalar_select %p88, %s89, %s90
      %p94 = pneg %p88
      %p95 = scmp.eq.s32.totalorder %s13, 3
      %p96 = por %p94, %p95
      %p97 = scmp.ne.s32.totalorder %s89, %s92
      %p98 = scmp.eq.s32.totalorder %s13, 0
      %p99 = por %p97, %p98
      %p100 = scmp.ne.s32.totalorder %s89, %s92
      %p101 = scmp.eq.s32.totalorder %s18, 3
      %p102 = por %p100, %p101
      %p103 = scmp.ne.s32.totalorder %s92, %s93
      %p104 = scmp.eq.s32.totalorder %s18, 0
      %p105 = por %p103, %p104
      %p106 = scmp.ne.s32.totalorder %s92, %s93
      %p107 = scmp.eq.s32.totalorder %s19, 3
      %p108 = por %p106, %p107
      %p110 = scmp.ne.s32.totalorder %s93, %s109
      %p111 = scmp.eq.s32.totalorder %s19, 0
      %p112 = por %p110, %p111
      %s113 = ssub.s32 %s20, %s32
      %s114 = ssub.s32 %s21, %s28
      %s115 = sor.u32 %s113, %s114
      %p116 = scmp.eq.s32.totalorder %s115, 0
      %s118 = sadd.s32 %s117, 1
      %s119 = scalar_select %p116, %s117, %s118
      %p122 = pneg %p116
      %p123 = scmp.eq.s32.totalorder %s13, 3
      %p124 = por %p122, %p123
      %p125 = scmp.ne.s32.totalorder %s117, %s120
      %p126 = scmp.eq.s32.totalorder %s13, 0
      %p127 = por %p125, %p126
      %p128 = scmp.ne.s32.totalorder %s117, %s120
      %p129 = scmp.eq.s32.totalorder %s18, 3
      %p130 = por %p128, %p129
      %p131 = scmp.ne.s32.totalorder %s120, %s121
      %p132 = scmp.eq.s32.totalorder %s18, 0
      %p133 = por %p131, %p132
      %p134 = scmp.ne.s32.totalorder %s120, %s121
      %p135 = scmp.eq.s32.totalorder %s19, 3
      %p136 = por %p134, %p135
      %p138 = scmp.ne.s32.totalorder %s121, %s137
      %p139 = scmp.eq.s32.totalorder %s19, 0
      %p140 = por %p138, %p139
      %s141 = ssub.s32 %s20, %s32
      %s142 = ssub.s32 %s21, %s28
      %s143 = sor.u32 %s141, %s142
      %p144 = scmp.eq.s32.totalorder %s143, 0
      %s146 = sadd.s32 %s145, 1
      %s147 = scalar_select %p144, %s145, %s146
      %p150 = pneg %p144
      %p151 = scmp.eq.s32.totalorder %s13, 3
      %p152 = por %p150, %p151
      %p153 = scmp.ne.s32.totalorder %s145, %s148
      %p154 = scmp.eq.s32.totalorder %s13, 0
      %p155 = por %p153, %p154
      %p156 = scmp.ne.s32.totalorder %s145, %s148
      %p157 = scmp.eq.s32.totalorder %s18, 3
      %p158 = por %p156, %p157
      %p159 = scmp.ne.s32.totalorder %s148, %s149
      %p160 = scmp.eq.s32.totalorder %s18, 0
      %p161 = por %p159, %p160
      %p162 = scmp.ne.s32.totalorder %s148, %s149
      %p163 = scmp.eq.s32.totalorder %s19, 3
      %p164 = por %p162, %p163
      %p166 = scmp.ne.s32.totalorder %s149, %s165
      %p167 = scmp.eq.s32.totalorder %s19, 0
      %p168 = por %p166, %p167
      %p169 = scmp.le.s32.totalorder 1, %s13
      %p170 = scmp.lt.s32.totalorder %s13, 5
      %p171 = pnand %p169, %p170
      %p172 = pneg %p171
      // Predicated region
      $region9: #{tpu_custom_call.1} parent=5 // pred_check
        _
      $region10: #{tpu_custom_call.1} parent=5 // pred_check_branch
        %174 = sbr.rel (%p171) target = $region12
      $region11: #{tpu_custom_call.1} parent=5 // pred_region
        %s175 = ssub.s32 %s13, 1
        // Predicated region
        $region13: #{tpu_custom_call.1} parent=11 // pred_check
          %p176 = pneg %p79
        $region14: #{tpu_custom_call.1} parent=11 // pred_check_branch
          %178 = sbr.rel (%p176) target = $region16
        $region15: #{tpu_custom_call.1} parent=11 // pred_region
          %p179 = scmp.lt.s32.totalorder %s22, 1
          %s180 = scalar_select %p179, %s22, 1
          %s181 = smul.addr %s180, 32
          %s182 = smul.addr %s181, 4
          %s183 = scalar_lea.vmem %s1, %s182
        $region16: #{tpu_custom_call.1} parent=11 // pred_fallthru
          _
        // Predicated region
        $region17: #{tpu_custom_call.1} parent=11 // pred_check
          %p184 = pneg %p105
        $region18: #{tpu_custom_call.1} parent=11 // pred_check_branch
          %186 = sbr.rel (%p184) target = $region20
        $region19: #{tpu_custom_call.1} parent=11 // pred_region
          %p187 = scmp.lt.s32.totalorder %s22, 1
          %s188 = scalar_select %p187, %s22, 1
          %s189 = smul.addr %s188, 2
          %s190 = smul.addr %s189, 2
          %s191 = scalar_lea.vmem %s2, %s190
        $region20: #{tpu_custom_call.1} parent=11 // pred_fallthru
          _
      $region12: #{tpu_custom_call.1} parent=5 // pred_fallthru
        _
      %p192 = scmp.lt.s32.totalorder %s13, 4
      // Predicated region
      $region21: #{tpu_custom_call.1} parent=5 // pred_check
        %p193 = pneg %p192
      $region22: #{tpu_custom_call.1} parent=5 // pred_check_branch
        %195 = sbr.rel (%p193) target = $region24
      $region23: #{tpu_custom_call.1} parent=5 // pred_region
        // Predicated region
        $region25: #{tpu_custom_call.1} parent=23 // pred_check
          %p196 = pneg %p47
        $region26: #{tpu_custom_call.1} parent=23 // pred_check_branch
          %198 = sbr.rel (%p196) target = $region28
        $region27: #{tpu_custom_call.1} parent=23 // pred_region
          %s199 = smul.u32 16, %s21
          %p200 = scmp.lt.s32.totalorder %s20, 1
          %s201 = scalar_select %p200, %s20, 1
          %p202 = scmp.lt.s32.totalorder %s199, 31
          %s203 = scalar_select %p202, %s199, 31
          %s204 = smul.addr %s201, 32
          %s205 = sadd.s32 %s203, %s204
          %s206 = smul.addr %s205, 4
          %s207 = scalar_lea.vmem %s0, %s206
          %s208 = smul.u32 16, %s21
        $region28: #{tpu_custom_call.1} parent=23 // pred_fallthru
          _
        // Predicated region
        $region29: #{tpu_custom_call.1} parent=23 // pred_check
          %p209 = pneg %p127
        $region30: #{tpu_custom_call.1} parent=23 // pred_check_branch
          %211 = sbr.rel (%p209) target = $region32
        $region31: #{tpu_custom_call.1} parent=23 // pred_region
          %p212 = scmp.lt.s32.totalorder %s20, 1
          %s213 = scalar_select %p212, %s20, 1
          %p214 = scmp.lt.s32.totalorder %s21, 1
          %s215 = scalar_select %p214, %s21, 1
          %s216 = smul.addr %s213, 2
          %s217 = sadd.s32 %s215, %s216
          %s218 = smul.addr %s217, 4
          %s219 = scalar_lea.vmem %s3, %s218
        $region32: #{tpu_custom_call.1} parent=23 // pred_fallthru
          _
      $region24: #{tpu_custom_call.1} parent=5 // pred_fallthru
        _
      %p220 = scmp.le.s32.totalorder 1, %s13
      %p221 = scmp.lt.s32.totalorder %s13, 5
      %p222 = pnand %p220, %p221
      %p223 = pneg %p222
      // Predicated region
      $region33: #{tpu_custom_call.1} parent=5 // pred_check
        _
      $region34: #{tpu_custom_call.1} parent=5 // pred_check_branch
        %225 = sbr.rel (%p222) target = $region36
      $region35: #{tpu_custom_call.1} parent=5 // pred_region
        %s226 = ssub.s32 %s13, 1
        %s227 = smul.u32 16, %s23
        %p228 = scmp.lt.s32.totalorder %s22, 1
        %s229 = scalar_select %p228, %s22, 1
        %p230 = scmp.lt.s32.totalorder %s227, 31
        %s231 = scalar_select %p230, %s227, 31
        %s232 = smul.addr %s229, 32
        %s233 = sadd.s32 %s231, %s232
        %s234 = smul.addr %s233, 4
        %s235 = scalar_lea.vmem %s0, %s234
        %p236 = pneg %p53
        %p237 = pneg %p50
        %p238 = scmp.lt.s32.totalorder %s22, 1
        %s239 = scalar_select %p238, %s22, 1
        %s240 = smul.addr %s239, 32
        %s241 = smul.addr %s240, 4
        %s242 = scalar_lea.vmem %s1, %s241
        %p243 = pneg %p79
        %p244 = pneg %p76
        %p245 = scmp.lt.s32.totalorder %s22, 1
        %s246 = scalar_select %p245, %s22, 1
        %s247 = smul.addr %s246, 2
        %s248 = smul.addr %s247, 2
        %s249 = scalar_lea.vmem %s2, %s248
        %p250 = pneg %p105
        %p251 = pneg %p102
        %p252 = scmp.lt.s32.totalorder %s22, 1
        %s253 = scalar_select %p252, %s22, 1
        %p254 = scmp.lt.s32.totalorder %s23, 1
        %s255 = scalar_select %p254, %s23, 1
        %s256 = smul.addr %s253, 2
        %s257 = sadd.s32 %s255, %s256
        %s258 = smul.addr %s257, 4
        %s259 = scalar_lea.vmem %s3, %s258
        %p260 = pneg %p133
        %p261 = pneg %p130
        %p262 = pneg %p161
        %p263 = pneg %p158
        %s264 = sand.u32 %s148, 1
        %s265 = scalar_lea.sflag [#allocation3], %s264
        %s266 = sand.u32 %s148, 1
        %s267 = smul.addr %s266, 4
        %s268 = scalar_lea.vmem [#allocation2], %s267
        %s269 = smul.u32 16, %s23
        %p270 = scmp.lt.s32.totalorder %s22, 1
        %s271 = scalar_select %p270, %s22, 1
        %p272 = scmp.lt.s32.totalorder %s269, 31
        %s273 = scalar_select %p272, %s269, 31
        %s274 = smul.addr %s271, 32
        %s275 = sadd.s32 %s273, %s274
        %s276 = smul.addr %s275, 4
        %s277 = scalar_lea.vmem %s0, %s276
        %s278 = smul.u32 16, %s23
        %p279 = scmp.lt.s32.totalorder %s22, 1
        %s280 = scalar_select %p279, %s22, 1
        %s281 = smul.addr %s280, 32
        %s282 = smul.addr %s281, 4
        %s283 = scalar_lea.vmem %s1, %s282
        %p284 = scmp.lt.s32.totalorder %s22, 1
        %s285 = scalar_select %p284, %s22, 1
        %s286 = smul.addr %s285, 2
        %s287 = smul.addr %s286, 2
        %s288 = scalar_lea.vmem %s2, %s287
        %p289 = scmp.lt.s32.totalorder %s22, 1
        %s290 = scalar_select %p289, %s22, 1
        %p291 = scmp.lt.s32.totalorder %s23, 1
        %s292 = scalar_select %p291, %s23, 1
        %s293 = smul.addr %s290, 2
        %s294 = sadd.s32 %s292, %s293
        %s295 = smul.addr %s294, 4
        %s296 = scalar_lea.vmem %s3, %s295
        %v298 = vld [vmem:[%s283] sm:$0xf]
        %v299 = vld [vmem:[%s283 + $0x4] sm:$0xf]
        %v300 = vld [vmem:[%s283 + $0x8] sm:$0xf]
        %v301 = vld [vmem:[%s283 + $0xc] sm:$0xf]
        %v302 = vld [vmem:[%s283 + $0x10] sm:$0xf]
        %v303 = vld [vmem:[%s283 + $0x14] sm:$0xf]
        %v304 = vld [vmem:[%s283 + $0x18] sm:$0xf]
        %v305 = vld [vmem:[%s283 + $0x1c] sm:$0xf]
        %v306 = vld [vmem:[%s283 + $0x20] sm:$0xf]
        %v307 = vld [vmem:[%s283 + $0x24] sm:$0xf]
        %v308 = vld [vmem:[%s283 + $0x28] sm:$0xf]
        %v309 = vld [vmem:[%s283 + $0x2c] sm:$0xf]
        %v310 = vld [vmem:[%s283 + $0x30] sm:$0xf]
        %v311 = vld [vmem:[%s283 + $0x34] sm:$0xf]
        %v312 = vld [vmem:[%s283 + $0x38] sm:$0xf]
        %v313 = vld [vmem:[%s283 + $0x3c] sm:$0xf]
        %v314 = vld [vmem:[%s283 + $0x40] sm:$0xf]
        %v315 = vld [vmem:[%s283 + $0x44] sm:$0xf]
        %v316 = vld [vmem:[%s283 + $0x48] sm:$0xf]
        %v317 = vld [vmem:[%s283 + $0x4c] sm:$0xf]
        %v318 = vld [vmem:[%s283 + $0x50] sm:$0xf]
        %v319 = vld [vmem:[%s283 + $0x54] sm:$0xf]
        %v320 = vld [vmem:[%s283 + $0x58] sm:$0xf]
        %v321 = vld [vmem:[%s283 + $0x5c] sm:$0xf]
        %v322 = vld [vmem:[%s283 + $0x60] sm:$0xf]
        %v323 = vld [vmem:[%s283 + $0x64] sm:$0xf]
        %v324 = vld [vmem:[%s283 + $0x68] sm:$0xf]
        %v325 = vld [vmem:[%s283 + $0x6c] sm:$0xf]
        %v326 = vld [vmem:[%s283 + $0x70] sm:$0xf]
        %v327 = vld [vmem:[%s283 + $0x74] sm:$0xf]
        %v328 = vld [vmem:[%s283 + $0x78] sm:$0xf]
        %v329 = vld [vmem:[%s283 + $0x7c] sm:$0xf]
        %v330 = vld [vmem:[%s277] sm:$0xf]
        %v331 = vld [vmem:[%s277 + $0x4] sm:$0xf]
        %v332 = vld [vmem:[%s277 + $0x8] sm:$0xf]
        %v333 = vld [vmem:[%s277 + $0xc] sm:$0xf]
        %v334 = vld [vmem:[%s277 + $0x10] sm:$0xf]
        %v335 = vld [vmem:[%s277 + $0x14] sm:$0xf]
        %v336 = vld [vmem:[%s277 + $0x18] sm:$0xf]
        %v337 = vld [vmem:[%s277 + $0x1c] sm:$0xf]
        %v338 = vld [vmem:[%s277 + $0x20] sm:$0xf]
        %v339 = vld [vmem:[%s277 + $0x24] sm:$0xf]
        %v340 = vld [vmem:[%s277 + $0x28] sm:$0xf]
        %v341 = vld [vmem:[%s277 + $0x2c] sm:$0xf]
        %v342 = vld [vmem:[%s277 + $0x30] sm:$0xf]
        %v343 = vld [vmem:[%s277 + $0x34] sm:$0xf]
        %v344 = vld [vmem:[%s277 + $0x38] sm:$0xf]
        %v345 = vld [vmem:[%s277 + $0x3c] sm:$0xf]
        %v378 = vunpack.c.l.b16 %v298
        %v379 = vunpack.c.l.b16 %v299
        %v380 = vunpack.c.l.b16 %v300
        %v381 = vunpack.c.l.b16 %v301
        %v382 = vunpack.c.l.b16 %v302
        %v383 = vunpack.c.l.b16 %v303
        %v384 = vunpack.c.l.b16 %v304
        %v385 = vunpack.c.l.b16 %v305
        %v386 = vunpack.c.l.b16 %v306
        %v387 = vunpack.c.l.b16 %v307
        %v388 = vunpack.c.l.b16 %v308
        %v389 = vunpack.c.l.b16 %v309
        %v390 = vunpack.c.l.b16 %v310
        %v391 = vunpack.c.l.b16 %v311
        %v392 = vunpack.c.l.b16 %v312
        %v393 = vunpack.c.l.b16 %v313
        %v394 = vunpack.c.l.b16 %v314
        %v395 = vunpack.c.l.b16 %v315
        %v396 = vunpack.c.l.b16 %v316
        %v397 = vunpack.c.l.b16 %v317
        %v398 = vunpack.c.l.b16 %v318
        %v399 = vunpack.c.l.b16 %v319
        %v400 = vunpack.c.l.b16 %v320
        %v401 = vunpack.c.l.b16 %v321
        %v402 = vunpack.c.l.b16 %v322
        %v403 = vunpack.c.l.b16 %v323
        %v404 = vunpack.c.l.b16 %v324
        %v405 = vunpack.c.l.b16 %v325
        %v406 = vunpack.c.l.b16 %v326
        %v407 = vunpack.c.l.b16 %v327
        %v408 = vunpack.c.l.b16 %v328
        %v409 = vunpack.c.l.b16 %v329
        %v410 = vpack.c.b16 %v379, %v378
        %v411 = vpack.c.b16 %v381, %v380
        %v412 = vpack.c.b16 %v383, %v382
        %v413 = vpack.c.b16 %v385, %v384
        %v414 = vpack.c.b16 %v387, %v386
        %v415 = vpack.c.b16 %v389, %v388
        %v416 = vpack.c.b16 %v391, %v390
        %v417 = vpack.c.b16 %v393, %v392
        %v418 = vpack.c.b16 %v395, %v394
        %v419 = vpack.c.b16 %v397, %v396
        %v420 = vpack.c.b16 %v399, %v398
        %v421 = vpack.c.b16 %v401, %v400
        %v422 = vpack.c.b16 %v403, %v402
        %v423 = vpack.c.b16 %v405, %v404
        %v424 = vpack.c.b16 %v407, %v406
        %v425 = vpack.c.b16 %v409, %v408
        %v442 = vunpack.c.l.b16 %v330
        %v443 = vunpack.c.l.b16 %v331
        %v444 = vunpack.c.l.b16 %v332
        %v445 = vunpack.c.l.b16 %v333
        %v446 = vunpack.c.l.b16 %v334
        %v447 = vunpack.c.l.b16 %v335
        %v448 = vunpack.c.l.b16 %v336
        %v449 = vunpack.c.l.b16 %v337
        %v450 = vunpack.c.l.b16 %v338
        %v451 = vunpack.c.l.b16 %v339
        %v452 = vunpack.c.l.b16 %v340
        %v453 = vunpack.c.l.b16 %v341
        %v454 = vunpack.c.l.b16 %v342
        %v455 = vunpack.c.l.b16 %v343
        %v456 = vunpack.c.l.b16 %v344
        %v457 = vunpack.c.l.b16 %v345
        %v458 = vpack.c.b16 %v443, %v442
        %v459 = vpack.c.b16 %v445, %v444
        %v460 = vpack.c.b16 %v447, %v446
        %v461 = vpack.c.b16 %v449, %v448
        %v462 = vpack.c.b16 %v451, %v450
        %v463 = vpack.c.b16 %v453, %v452
        %v464 = vpack.c.b16 %v455, %v454
        %v465 = vpack.c.b16 %v457, %v456
        %vm466 = vcmask 31744
        %v468 = vsel %vm466, %v410, 0
        %v471 = vsel %vm466, %v411, 0
        %v474 = vsel %vm466, %v412, 0
        %v477 = vsel %vm466, %v413, 0
        %v480 = vsel %vm466, %v414, 0
        %v483 = vsel %vm466, %v415, 0
        %v486 = vsel %vm466, %v416, 0
        %v489 = vsel %vm466, %v417, 0
        %v492 = vsel %vm466, %v418, 0
        %v495 = vsel %vm466, %v419, 0
        %v498 = vsel %vm466, %v420, 0
        %v501 = vsel %vm466, %v421, 0
        %v504 = vsel %vm466, %v422, 0
        %v507 = vsel %vm466, %v423, 0
        %v510 = vsel %vm466, %v424, 0
        %v513 = vsel %vm466, %v425, 0
        %v516 = vsel %vm466, %v458, 0
        %v519 = vsel %vm466, %v459, 0
        %v522 = vsel %vm466, %v460, 0
        %v525 = vsel %vm466, %v461, 0
        %v528 = vsel %vm466, %v462, 0
        %v531 = vsel %vm466, %v463, 0
        %v534 = vsel %vm466, %v464, 0
        %v537 = vsel %vm466, %v465, 0
        %539 = vmatprep.subr.bf16.mxu0 0
        %540 = vmatpush1.bf16.xpose.msra.mxu0 %v516
        %541 = vmatprep.subr.bf16.mxu0 0
        %542 = vmatpush1.bf16.xpose.msra.mxu0 %v519
        %543 = vmatprep.subr.bf16.mxu0 0
        %544 = vmatpush1.bf16.xpose.msra.mxu0 %v522
        %545 = vmatprep.subr.bf16.mxu0 0
        %546 = vmatpush1.bf16.xpose.msra.mxu0 %v525
        %547 = vmatprep.subr.bf16.mxu0 0
        %548 = vmatpush1.bf16.xpose.msra.mxu0 %v528
        %549 = vmatprep.subr.bf16.mxu0 0
        %550 = vmatpush1.bf16.xpose.msra.mxu0 %v531
        %551 = vmatprep.subr.bf16.mxu0 0
        %552 = vmatpush1.bf16.xpose.msra.mxu0 %v534
        %553 = vmatprep.subr.bf16.mxu0 0
        %554 = vmatpush1.bf16.xpose.msra.mxu0 %v537
        %555 = vmatprep.subr.bf16.mxu0 0
        %556 = vmatpush1.bf16.xpose.msra.mxu0 0
        %557 = vmatprep.subr.bf16.mxu0 0
        %558 = vmatpush1.bf16.xpose.msra.mxu0 0
        %559 = vmatprep.subr.bf16.mxu0 0
        %560 = vmatpush1.bf16.xpose.msra.mxu0 0
        %561 = vmatprep.subr.bf16.mxu0 0
        %562 = vmatpush1.bf16.xpose.msra.mxu0 0
        %563 = vmatprep.subr.bf16.mxu0 0
        %564 = vmatpush1.bf16.xpose.msra.mxu0 0
        %565 = vmatprep.subr.bf16.mxu0 0
        %566 = vmatpush1.bf16.xpose.msra.mxu0 0
        %567 = vmatprep.subr.bf16.mxu0 0
        %568 = vmatpush1.bf16.xpose.msra.mxu0 0
        %569 = vmatprep.subr.bf16.mxu0 0
        %570 = vmatpush1.bf16.xpose.msra.mxu0 0
        %571 = vmatprep.mubr.bf16.mxu0 0
        %572 = vmatmul.mubr.bf16.gmra.mrb[0].mxu0 %v468
        %v573 = vpop.f32.mrb[0].mxu0
        %v574 = vadd.f32 0.0, %v573
        %v575 = vpop.f32.mrb[0].mxu0
        %v576 = vpop.f32.mrb[0].mxu0
        %v577 = vadd.f32 0.0, %v576
        %v578 = vpop.f32.mrb[0].mxu0
        %579 = vmatprep.mubr.bf16.mxu0 0
        %580 = vmatmul.mubr.bf16.gmra.mrb[0].mxu0 %v471
        %v581 = vpop.f32.mrb[0].mxu0
        %v582 = vadd.f32 0.0, %v581
        %v583 = vpop.f32.mrb[0].mxu0
        %v584 = vpop.f32.mrb[0].mxu0
        %v585 = vadd.f32 0.0, %v584
        %v586 = vpop.f32.mrb[0].mxu0
        %587 = vmatprep.mubr.bf16.mxu0 0
        %588 = vmatmul.mubr.bf16.gmra.mrb[0].mxu0 %v474
        %v589 = vpop.f32.mrb[0].mxu0
        %v590 = vadd.f32 0.0, %v589
        %v591 = vpop.f32.mrb[0].mxu0
        %v592 = vpop.f32.mrb[0].mxu0
        %v593 = vadd.f32 0.0, %v592
        %v594 = vpop.f32.mrb[0].mxu0
        %595 = vmatprep.mubr.bf16.mxu0 0
        %596 = vmatmul.mubr.bf16.gmra.mrb[0].mxu0 %v477
        %v597 = vpop.f32.mrb[0].mxu0
        %v598 = vadd.f32 0.0, %v597
        %v599 = vpop.f32.mrb[0].mxu0
        %v600 = vpop.f32.mrb[0].mxu0
        %v601 = vadd.f32 0.0, %v600
        %v602 = vpop.f32.mrb[0].mxu0
        %603 = vmatprep.mubr.bf16.mxu0 0
        %604 = vmatmul.mubr.bf16.gmra.mrb[0].mxu0 %v480
        %v605 = vpop.f32.mrb[0].mxu0
        %v606 = vadd.f32 0.0, %v605
        %v607 = vpop.f32.mrb[0].mxu0
        %v608 = vpop.f32.mrb[0].mxu0
        %v609 = vadd.f32 0.0, %v608
        %v610 = vpop.f32.mrb[0].mxu0
        %611 = vmatprep.mubr.bf16.mxu0 0
        %612 = vmatmul.mubr.bf16.gmra.mrb[0].mxu0 %v483
        %v613 = vpop.f32.mrb[0].mxu0
        %v614 = vadd.f32 0.0, %v613
        %v615 = vpop.f32.mrb[0].mxu0
        %v616 = vpop.f32.mrb[0].mxu0
        %v617 = vadd.f32 0.0, %v616
        %v618 = vpop.f32.mrb[0].mxu0
        %619 = vmatprep.mubr.bf16.mxu0 0
        %620 = vmatmul.mubr.bf16.gmra.mrb[0].mxu0 %v486
        %v621 = vpop.f32.mrb[0].mxu0
        %v622 = vadd.f32 0.0, %v621
        %v623 = vpop.f32.mrb[0].mxu0
        %v624 = vpop.f32.mrb[0].mxu0
        %v625 = vadd.f32 0.0, %v624
        %v626 = vpop.f32.mrb[0].mxu0
        %627 = vmatprep.mubr.bf16.mxu0 0
        %628 = vmatmul.mubr.bf16.gmra.mrb[0].mxu0 %v489
        %v629 = vpop.f32.mrb[0].mxu0
        %v630 = vadd.f32 0.0, %v629
        %v631 = vpop.f32.mrb[0].mxu0
        %v632 = vpop.f32.mrb[0].mxu0
        %v633 = vadd.f32 0.0, %v632
        %v634 = vpop.f32.mrb[0].mxu0
        %635 = vmatprep.mubr.bf16.mxu0 0
        %636 = vmatmul.mubr.bf16.gmra.mrb[0].mxu0 %v492
        %v637 = vpop.f32.mrb[0].mxu0
        %v638 = vadd.f32 0.0, %v637
        %v639 = vpop.f32.mrb[0].mxu0
        %v640 = vpop.f32.mrb[0].mxu0
        %v641 = vadd.f32 0.0, %v640
        %v642 = vpop.f32.mrb[0].mxu0
        %643 = vmatprep.mubr.bf16.mxu0 0
        %644 = vmatmul.mubr.bf16.gmra.mrb[0].mxu0 %v495
        %v645 = vpop.f32.mrb[0].mxu0
        %v646 = vadd.f32 0.0, %v645
        %v647 = vpop.f32.mrb[0].mxu0
        %v648 = vpop.f32.mrb[0].mxu0
        %v649 = vadd.f32 0.0, %v648
        %v650 = vpop.f32.mrb[0].mxu0
        %651 = vmatprep.mubr.bf16.mxu0 0
        %652 = vmatmul.mubr.bf16.gmra.mrb[0].mxu0 %v498
        %v653 = vpop.f32.mrb[0].mxu0
        %v654 = vadd.f32 0.0, %v653
        %v655 = vpop.f32.mrb[0].mxu0
        %v656 = vpop.f32.mrb[0].mxu0
        %v657 = vadd.f32 0.0, %v656
        %v658 = vpop.f32.mrb[0].mxu0
        %659 = vmatprep.mubr.bf16.mxu0 0
        %660 = vmatmul.mubr.bf16.gmra.mrb[0].mxu0 %v501
        %v661 = vpop.f32.mrb[0].mxu0
        %v662 = vadd.f32 0.0, %v661
        %v663 = vpop.f32.mrb[0].mxu0
        %v664 = vpop.f32.mrb[0].mxu0
        %v665 = vadd.f32 0.0, %v664
        %v666 = vpop.f32.mrb[0].mxu0
        %667 = vmatprep.mubr.bf16.mxu0 0
        %668 = vmatmul.mubr.bf16.gmra.mrb[0].mxu0 %v504
        %v669 = vpop.f32.mrb[0].mxu0
        %v670 = vadd.f32 0.0, %v669
        %v671 = vpop.f32.mrb[0].mxu0
        %v672 = vpop.f32.mrb[0].mxu0
        %v673 = vadd.f32 0.0, %v672
        %v674 = vpop.f32.mrb[0].mxu0
        %675 = vmatprep.mubr.bf16.mxu0 0
        %676 = vmatmul.mubr.bf16.gmra.mrb[0].mxu0 %v507
        %v677 = vpop.f32.mrb[0].mxu0
        %v678 = vadd.f32 0.0, %v677
        %v679 = vpop.f32.mrb[0].mxu0
        %v680 = vpop.f32.mrb[0].mxu0
        %v681 = vadd.f32 0.0, %v680
        %v682 = vpop.f32.mrb[0].mxu0
        %683 = vmatprep.mubr.bf16.mxu0 0
        %684 = vmatmul.mubr.bf16.gmra.mrb[0].mxu0 %v510
        %v685 = vpop.f32.mrb[0].mxu0
        %v686 = vadd.f32 0.0, %v685
        %v687 = vpop.f32.mrb[0].mxu0
        %v688 = vpop.f32.mrb[0].mxu0
        %v689 = vadd.f32 0.0, %v688
        %v690 = vpop.f32.mrb[0].mxu0
        %691 = vmatprep.mubr.bf16.mxu0 0
        %692 = vmatmul.mubr.bf16.gmra.mrb[0].mxu0 %v513
        %v693 = vpop.f32.mrb[0].mxu0
        %v694 = vadd.f32 0.0, %v693
        %v695 = vpop.f32.mrb[0].mxu0
        %v696 = vpop.f32.mrb[0].mxu0
        %v697 = vadd.f32 0.0, %v696
        %v698 = vpop.f32.mrb[0].mxu0
        %699 = vdwg.mxu0
        %v700 = vmax.f32 %v574, %v590
        %v701 = vmax.f32 %v577, %v593
        %v702 = vmax.f32 %v582, %v598
        %v703 = vmax.f32 %v585, %v601
        %v704 = vmax.f32 %v700, %v606
        %v705 = vmax.f32 %v701, %v609
        %v706 = vmax.f32 %v702, %v614
        %v707 = vmax.f32 %v703, %v617
        %v708 = vmax.f32 %v704, %v622
        %v709 = vmax.f32 %v705, %v625
        %v710 = vmax.f32 %v706, %v630
        %v711 = vmax.f32 %v707, %v633
        %v712 = vmax.f32 %v708, %v638
        %v713 = vmax.f32 %v709, %v641
        %v714 = vmax.f32 %v710, %v646
        %v715 = vmax.f32 %v711, %v649
        %v716 = vmax.f32 %v712, %v654
        %v717 = vmax.f32 %v713, %v657
        %v718 = vmax.f32 %v714, %v662
        %v719 = vmax.f32 %v715, %v665
        %v720 = vmax.f32 %v716, %v670
        %v721 = vmax.f32 %v717, %v673
        %v722 = vmax.f32 %v718, %v678
        %v723 = vmax.f32 %v719, %v681
        %v724 = vmax.f32 %v720, %v686
        %v725 = vmax.f32 %v721, %v689
        %v726 = vmax.f32 %v722, %v694
        %v727 = vmax.f32 %v723, %v697
        %v728 = vmax.f32 %v724, %v725
        %v729 = vmax.f32 %v726, %v727
        %v730 = vmax.f32 %v728, %v729
        %v731 = vrot.slane %v730, 4
        %v732 = vmax.f32 %v730, %v731
        %v733 = vrot.slane %v732, 2
        %v734 = vmax.f32 %v732, %v733
        %v735 = vrot.slane %v734, 1
        %v736 = vmax.f32 %v734, %v735
        %v737 = vsub.f32 %v574, %v736
        %v738 = vsub.f32 %v577, %v736
        %v739 = vsub.f32 %v582, %v736
        %v740 = vsub.f32 %v585, %v736
        %v741 = vsub.f32 %v590, %v736
        %v742 = vsub.f32 %v593, %v736
        %v743 = vsub.f32 %v598, %v736
        %v744 = vsub.f32 %v601, %v736
        %v745 = vsub.f32 %v606, %v736
        %v746 = vsub.f32 %v609, %v736
        %v747 = vsub.f32 %v614, %v736
        %v748 = vsub.f32 %v617, %v736
        %v749 = vsub.f32 %v622, %v736
        %v750 = vsub.f32 %v625, %v736
        %v751 = vsub.f32 %v630, %v736
        %v752 = vsub.f32 %v633, %v736
        %v753 = vsub.f32 %v638, %v736
        %v754 = vsub.f32 %v641, %v736
        %v755 = vsub.f32 %v646, %v736
        %v756 = vsub.f32 %v649, %v736
        %v757 = vsub.f32 %v654, %v736
        %v758 = vsub.f32 %v657, %v736
        %v759 = vsub.f32 %v662, %v736
        %v760 = vsub.f32 %v665, %v736
        %v761 = vsub.f32 %v670, %v736
        %v762 = vsub.f32 %v673, %v736
        %v763 = vsub.f32 %v678, %v736
        %v764 = vsub.f32 %v681, %v736
        %v765 = vsub.f32 %v686, %v736
        %v766 = vsub.f32 %v689, %v736
        %v767 = vsub.f32 %v694, %v736
        %v768 = vsub.f32 %v697, %v736
        %v769 = vmul.f32 %v737, 1.442695
        %v770 = vpow.pop %v769
        %v771 = vmul.f32 %v738, 1.442695
        %v772 = vpow.pop %v771
        %v773 = vmul.f32 %v739, 1.442695
        %v774 = vpow.pop %v773
        %v775 = vmul.f32 %v740, 1.442695
        %v776 = vpow.pop %v775
        %v777 = vmul.f32 %v741, 1.442695
        %v778 = vpow.pop %v777
        %v779 = vmul.f32 %v742, 1.442695
        %v780 = vpow.pop %v779
        %v781 = vmul.f32 %v743, 1.442695
        %v782 = vpow.pop %v781
        %v783 = vmul.f32 %v744, 1.442695
        %v784 = vpow.pop %v783
        %v785 = vmul.f32 %v745, 1.442695
        %v786 = vpow.pop %v785
        %v787 = vmul.f32 %v746, 1.442695
        %v788 = vpow.pop %v787
        %v789 = vmul.f32 %v747, 1.442695
        %v790 = vpow.pop %v789
        %v791 = vmul.f32 %v748, 1.442695
        %v792 = vpow.pop %v791
        %v793 = vmul.f32 %v749, 1.442695
        %v794 = vpow.pop %v793
        %v795 = vmul.f32 %v750, 1.442695
        %v796 = vpow.pop %v795
        %v797 = vmul.f32 %v751, 1.442695
        %v798 = vpow.pop %v797
        %v799 = vmul.f32 %v752, 1.442695
        %v800 = vpow.pop %v799
        %v801 = vmul.f32 %v753, 1.442695
        %v802 = vpow.pop %v801
        %v803 = vmul.f32 %v754, 1.442695
        %v804 = vpow.pop %v803
        %v805 = vmul.f32 %v755, 1.442695
        %v806 = vpow.pop %v805
        %v807 = vmul.f32 %v756, 1.442695
        %v808 = vpow.pop %v807
        %v809 = vmul.f32 %v757, 1.442695
        %v810 = vpow.pop %v809
        %v811 = vmul.f32 %v758, 1.442695
        %v812 = vpow.pop %v811
        %v813 = vmul.f32 %v759, 1.442695
        %v814 = vpow.pop %v813
        %v815 = vmul.f32 %v760, 1.442695
        %v816 = vpow.pop %v815
        %v817 = vmul.f32 %v761, 1.442695
        %v818 = vpow.pop %v817
        %v819 = vmul.f32 %v762, 1.442695
        %v820 = vpow.pop %v819
        %v821 = vmul.f32 %v763, 1.442695
        %v822 = vpow.pop %v821
        %v823 = vmul.f32 %v764, 1.442695
        %v824 = vpow.pop %v823
        %v825 = vmul.f32 %v765, 1.442695
        %v826 = vpow.pop %v825
        %v827 = vmul.f32 %v766, 1.442695
        %v828 = vpow.pop %v827
        %v829 = vmul.f32 %v767, 1.442695
        %v830 = vpow.pop %v829
        %v831 = vmul.f32 %v768, 1.442695
        %v832 = vpow.pop %v831
        %v833 = vadd.f32 %v770, %v772
        %v834 = vadd.f32 %v833, %v774
        %v835 = vadd.f32 %v834, %v776
        %v836 = vadd.f32 %v835, %v778
        %v837 = vadd.f32 %v836, %v780
        %v838 = vadd.f32 %v837, %v782
        %v839 = vadd.f32 %v838, %v784
        %v840 = vadd.f32 %v839, %v786
        %v841 = vadd.f32 %v840, %v788
        %v842 = vadd.f32 %v841, %v790
        %v843 = vadd.f32 %v842, %v792
        %v844 = vadd.f32 %v843, %v794
        %v845 = vadd.f32 %v844, %v796
        %v846 = vadd.f32 %v845, %v798
        %v847 = vadd.f32 %v846, %v800
        %v848 = vadd.f32 %v847, %v802
        %v849 = vadd.f32 %v848, %v804
        %v850 = vadd.f32 %v849, %v806
        %v851 = vadd.f32 %v850, %v808
        %v852 = vadd.f32 %v851, %v810
        %v853 = vadd.f32 %v852, %v812
        %v854 = vadd.f32 %v853, %v814
        %v855 = vadd.f32 %v854, %v816
        %v856 = vadd.f32 %v855, %v818
        %v857 = vadd.f32 %v856, %v820
        %v858 = vadd.f32 %v857, %v822
        %v859 = vadd.f32 %v858, %v824
        %v860 = vadd.f32 %v859, %v826
        %v861 = vadd.f32 %v860, %v828
        %v862 = vadd.f32 %v861, %v830
        %v863 = vadd.f32 %v862, %v832
        %v864 = vrot.slane %v863, 4
        %v865 = vadd.f32 %v863, %v864
        %v866 = vrot.slane %v865, 2
        %v867 = vadd.f32 %v865, %v866
        %v868 = vrot.slane %v867, 1
        %v869 = vadd.f32 %v867, %v868
        %v870 = vld [vmem:[%s288] sm:$0xf]
        %v871 = vpack.c.bf16 %v772, %v770
        %v872 = vpack.c.bf16 %v776, %v774
        %v873 = vpack.c.bf16 %v780, %v778
        %v874 = vpack.c.bf16 %v784, %v782
        %v875 = vpack.c.bf16 %v788, %v786
        %v876 = vpack.c.bf16 %v792, %v790
        %v877 = vpack.c.bf16 %v796, %v794
        %v878 = vpack.c.bf16 %v800, %v798
        %v879 = vpack.c.bf16 %v804, %v802
        %v880 = vpack.c.bf16 %v808, %v806
        %v881 = vpack.c.bf16 %v812, %v810
        %v882 = vpack.c.bf16 %v816, %v814
        %v883 = vpack.c.bf16 %v820, %v818
        %v884 = vpack.c.bf16 %v824, %v822
        %v885 = vpack.c.bf16 %v828, %v826
        %v886 = vpack.c.bf16 %v832, %v830
        %v889 = vunpack.c.l.s4 1983009808
        %v890 = vunpack.c.0.s8 %v889
        %v891 = vlaneseq
        %v892 = vshrl.u32 %v891, 7
        %v893 = vsub.s32 %v890, %v892
        %v894 = vrot.slane %v870, %v893
        %v895 = vcombine.high %v894, %v894
        %898 = vmatprep.subr.bf16.mxu0 0
        %899 = vmatpush1.bf16.msra.mxu0 %v871
        %900 = vmatprep.subr.bf16.mxu0 0
        %901 = vmatpush1.bf16.msra.mxu0 %v872
        %902 = vmatprep.subr.bf16.mxu0 0
        %903 = vmatpush1.bf16.msra.mxu0 %v873
        %904 = vmatprep.subr.bf16.mxu0 0
        %905 = vmatpush1.bf16.msra.mxu0 %v874
        %906 = vmatprep.subr.bf16.mxu0 0
        %907 = vmatpush1.bf16.msra.mxu0 %v875
        %908 = vmatprep.subr.bf16.mxu0 0
        %909 = vmatpush1.bf16.msra.mxu0 %v876
        %910 = vmatprep.subr.bf16.mxu0 0
        %911 = vmatpush1.bf16.msra.mxu0 %v877
        %912 = vmatprep.subr.bf16.mxu0 0
        %913 = vmatpush1.bf16.msra.mxu0 %v878
        %914 = vmatprep.subr.bf16.mxu0 0
        %915 = vmatpush1.bf16.msra.mxu0 %v879
        %916 = vmatprep.subr.bf16.mxu0 0
        %917 = vmatpush1.bf16.msra.mxu0 %v880
        %918 = vmatprep.subr.bf16.mxu0 0
        %919 = vmatpush1.bf16.msra.mxu0 %v881
        %920 = vmatprep.subr.bf16.mxu0 0
        %921 = vmatpush1.bf16.msra.mxu0 %v882
        %922 = vmatprep.subr.bf16.mxu0 0
        %923 = vmatpush1.bf16.msra.mxu0 %v883
        %924 = vmatprep.subr.bf16.mxu0 0
        %925 = vmatpush1.bf16.msra.mxu0 %v884
        %926 = vmatprep.subr.bf16.mxu0 0
        %927 = vmatpush1.bf16.msra.mxu0 %v885
        %928 = vmatprep.subr.bf16.mxu0 0
        %929 = vmatpush1.bf16.msra.mxu0 %v886
        %930 = vmatprep.mubr.bf16.mxu0 %v895
        %931 = vmatmul.mubr.bf16.gmra.mrb[0].mxu0 %v894
        %v932 = vpop.f32.mrb[0].mxu0
        %v933 = vadd.f32 0.0, %v932
        %v934 = vpop.f32.mrb[0].mxu0
        %v935 = vpop.f32.mrb[0].mxu0
        %v936 = vpop.f32.mrb[0].mxu0
        %937 = vdwg.mxu0
        %v938 = vrcp.pop %v869
        %v939 = vmul.f32 %v933, %v938
        %v940 = vld [vmem:[%s296] sm:$0xf]
        %v941 = vadd.f32 %v939, %v940
        %942 = vst [vmem:[%s268] sm:$0xf] %v941
        %s943 = sand.u32 %s148, 1
        %s944 = scalar_lea.sflag [#allocation3], %s943
        %s945 = sand.u32 %s148, 1
        %s946 = smul.addr %s945, 4
        %s947 = scalar_lea.vmem [#allocation2], %s946
        // Predicated region
        $region37: #{tpu_custom_call.1} parent=35 // pred_check
          %p948 = pneg %p158
        $region38: #{tpu_custom_call.1} parent=35 // pred_check_branch
          %950 = sbr.rel (%p948) target = $region40
        $region39: #{tpu_custom_call.1} parent=35 // pred_region
          %s952 = ssub.s32 64, 64
          %953 = vsyncadd %s944, %s952
          %s954 = smul.addr %s22, 2
          %s955 = sadd.s32 %s23, %s954
          %s956 = smul.addr %s955, 64
          %s957 = scalar_lea.hbm %s4, %s956
          %s959 = sshll.u32 %s947, 4
          %s960 = int_to_ptr.vmem [resolvable:$true] %s959
          %962 = dma.vmem_to_hbm [thread:$0]  %s960, 64, %s957, %s944
        $region40: #{tpu_custom_call.1} parent=35 // pred_fallthru
          _
      $region36: #{tpu_custom_call.1} parent=5 // pred_fallthru
        _
      %p963 = scmp.le.s32.totalorder 2, %s13
      // Predicated region
      $region41: #{tpu_custom_call.1} parent=5 // pred_check
        %p964 = pneg %p963
      $region42: #{tpu_custom_call.1} parent=5 // pred_check_branch
        %966 = sbr.rel (%p964) target = $region44
      $region43: #{tpu_custom_call.1} parent=5 // pred_region
        %s967 = ssub.s32 %s13, 2
        // Predicated region
        $region45: #{tpu_custom_call.1} parent=43 // pred_check
          %p968 = pneg %p164
        $region46: #{tpu_custom_call.1} parent=43 // pred_check_branch
          %970 = sbr.rel (%p968) target = $region48
        $region47: #{tpu_custom_call.1} parent=43 // pred_region
          %s971 = sand.u32 %s149, 1
          %s972 = scalar_lea.sflag [#allocation3], %s971
          %s973 = sand.u32 %s149, 1
          %s974 = smul.addr %s973, 4
          %s975 = scalar_lea.vmem [#allocation2], %s974
          %976 = dma.done %s972, 64
        $region48: #{tpu_custom_call.1} parent=43 // pred_fallthru
          _
      $region44: #{tpu_custom_call.1} parent=5 // pred_fallthru
        _
    $region6: #{tpu_custom_call.1} parent=1 // loop_footer
      %s17 = sadd.s32 1, %s13
    $region7: #{tpu_custom_call.1} parent=1 // loop_footer_branch
      %12 = sbr.rel target = $region3
    $region8: #{tpu_custom_call.1} parent=1 // loop_exit
      _
    %977 = vsyncpa [#allocation3], 1
    %s978 = scalar_lea.sflag [#allocation3], 1
    %979 = vsyncpa %s978, 1

// kernel: tpu_custom_call.1
$region0: #{tpu_custom_call.1}
  #allocation0 [shape = 'u32[]', space=smem, size = 0x4, offset = 0x4, fixed_abs, tag = 'smem constant byte address 0x4 - core index']
  #allocation1 [shape = 'u32[144,128]{1,0:T(1,128)}', space=vmem, size = 0x12000, scoped, tag = 'internal scratch']
  %s0 = inlined_call_operand.vmem [shape: bf16[2,256,4], index: 0, kind: input, shape index: {}]
  %s1 = inlined_call_operand.vmem [shape: bf16[2,256,4], index: 1, kind: input, shape index: {}]
  %s2 = inlined_call_operand.vmem [shape: bf16[2,4,256], index: 2, kind: input, shape index: {}]
  %s3 = inlined_call_operand.vmem [shape: f32[2,4,256], index: 3, kind: input, shape index: {}]
  %s4 = inlined_call_operand.hbm [shape: f32[2,4,256], index: 4, kind: output, shape index: {}]
  %s5 = sld [smem:[#allocation0]]
  $region49: #{tpu_custom_call.1} parent=0
    _
  %s7 = ssub.s32 1, %s5
  %s8 = scalar_select 0, %s7, %s5
  $region1: #{tpu_custom_call.1} parent=0
    #allocation2 [shape = 'u8[4096]{0}', space=vmem, size = 0x1000, scoped, tag = 'output window, operand 0']
    #allocation3 [shape = 's32[2]{0}', space=sflag, size = 0x8, scoped, tag = 'scoped memory for tpu_custom_call.1']
    %9 = vsyncpa [#allocation3], 0
    %s10 = scalar_lea.sflag [#allocation3], 1
    %11 = vsyncpa %s10, 0
    loop: start=0, step=1, limit=6
    $region2: #{tpu_custom_call.1} parent=1 // loop_pre_header
      _
    $region3: #{tpu_custom_call.1} parent=1 // loop_header
      %s13 = sphi 0, %s17
      %p14 = scmp.ge.s32.totalorder %s13, 6
      %s20 = sphi 0, %s32
      %s21 = sphi 0, %s28
      %s22 = sphi 0, %s20
      %s23 = sphi 0, %s21
      %s24 = sphi 0, %s22
      %s25 = sphi 0, %s23
      %s37 = sphi 0, %s39
      %s40 = sphi 0, %s37
      %s41 = sphi 0, %s40
      %s57 = sphi 0, %s41
      %s63 = sphi 0, %s65
      %s66 = sphi 0, %s63
      %s67 = sphi 0, %s66
      %s83 = sphi 0, %s67
      %s89 = sphi 0, %s91
      %s92 = sphi 0, %s89
      %s93 = sphi 0, %s92
      %s109 = sphi 0, %s93
      %s117 = sphi 0, %s119
      %s120 = sphi 0, %s117
      %s121 = sphi 0, %s120
      %s137 = sphi 0, %s121
      %s145 = sphi 0, %s147
      %s148 = sphi 0, %s145
      %s149 = sphi 0, %s148
      %s165 = sphi 0, %s149
    $region4: #{tpu_custom_call.1} parent=1 // loop_header_branch
      %16 = sbr.rel (%p14) target = $region8
    $region5: #{tpu_custom_call.1} parent=1 // loop_body
      %s18 = ssub.s32 %s13, 1
      %s19 = ssub.s32 %s13, 2
      %s26 = sadd.s32 1, %s21
      %p27 = scmp.ge.s32.totalorder %s26, 2
      %s28 = scalar_select %p27, 0, %s26
      %s29 = sadd.s32 1, %s20
      %s30 = scalar_select %p27, %s29, %s20
      %p31 = scmp.ge.s32.totalorder %s30, 2
      %s32 = scalar_select %p31, 0, %s30
      %s33 = ssub.s32 %s20, %s32
      %s34 = ssub.s32 %s21, %s28
      %s35 = sor.u32 %s33, %s34
      %p36 = scmp.eq.s32.totalorder %s35, 0
      %s38 = sadd.s32 %s37, 1
      %s39 = scalar_select %p36, %s37, %s38
      %p42 = pneg %p36
      %p43 = scmp.eq.s32.totalorder %s13, 3
      %p44 = por %p42, %p43
      %p45 = scmp.ne.s32.totalorder %s37, %s40
      %p46 = scmp.eq.s32.totalorder %s13, 0
      %p47 = por %p45, %p46
      %p48 = scmp.ne.s32.totalorder %s37, %s40
      %p49 = scmp.eq.s32.totalorder %s18, 3
      %p50 = por %p48, %p49
      %p51 = scmp.ne.s32.totalorder %s40, %s41
      %p52 = scmp.eq.s32.totalorder %s18, 0
      %p53 = por %p51, %p52
      %p54 = scmp.ne.s32.totalorder %s40, %s41
      %p55 = scmp.eq.s32.totalorder %s19, 3
      %p56 = por %p54, %p55
      %p58 = scmp.ne.s32.totalorder %s41, %s57
      %p59 = scmp.eq.s32.totalorder %s19, 0
      %p60 = por %p58, %p59
      %s61 = ssub.s32 %s20, %s32
      %p62 = scmp.eq.s32.totalorder %s61, 0
      %s64 = sadd.s32 %s63, 1
      %s65 = scalar_select %p62, %s63, %s64
      %p68 = pneg %p62
      %p69 = scmp.eq.s32.totalorder %s13, 3
      %p70 = por %p68, %p69
      %p71 = scmp.ne.s32.totalorder %s63, %s66
      %p72 = scmp.eq.s32.totalorder %s13, 0
      %p73 = por %p71, %p72
      %p74 = scmp.ne.s32.totalorder %s63, %s66
      %p75 = scmp.eq.s32.totalorder %s18, 3
      %p76 = por %p74, %p75
      %p77 = scmp.ne.s32.totalorder %s66, %s67
      %p78 = scmp.eq.s32.totalorder %s18, 0
      %p79 = por %p77, %p78
      %p80 = scmp.ne.s32.totalorder %s66, %s67
      %p81 = scmp.eq.s32.totalorder %s19, 3
      %p82 = por %p80, %p81
      %p84 = scmp.ne.s32.totalorder %s67, %s83
      %p85 = scmp.eq.s32.totalorder %s19, 0
      %p86 = por %p84, %p85
      %s87 = ssub.s32 %s20, %s32
      %p88 = scmp.eq.s32.totalorder %s87, 0
      %s90 = sadd.s32 %s89, 1
      %s91 = scalar_select %p88, %s89, %s90
      %p94 = pneg %p88
      %p95 = scmp.eq.s32.totalorder %s13, 3
      %p96 = por %p94, %p95
      %p97 = scmp.ne.s32.totalorder %s89, %s92
      %p98 = scmp.eq.s32.totalorder %s13, 0
      %p99 = por %p97, %p98
      %p100 = scmp.ne.s32.totalorder %s89, %s92
      %p101 = scmp.eq.s32.totalorder %s18, 3
      %p102 = por %p100, %p101
      %p103 = scmp.ne.s32.totalorder %s92, %s93
      %p104 = scmp.eq.s32.totalorder %s18, 0
      %p105 = por %p103, %p104
      %p106 = scmp.ne.s32.totalorder %s92, %s93
      %p107 = scmp.eq.s32.totalorder %s19, 3
      %p108 = por %p106, %p107
      %p110 = scmp.ne.s32.totalorder %s93, %s109
      %p111 = scmp.eq.s32.totalorder %s19, 0
      %p112 = por %p110, %p111
      %s113 = ssub.s32 %s20, %s32
      %s114 = ssub.s32 %s21, %s28
      %s115 = sor.u32 %s113, %s114
      %p116 = scmp.eq.s32.totalorder %s115, 0
      %s118 = sadd.s32 %s117, 1
      %s119 = scalar_select %p116, %s117, %s118
      %p122 = pneg %p116
      %p123 = scmp.eq.s32.totalorder %s13, 3
      %p124 = por %p122, %p123
      %p125 = scmp.ne.s32.totalorder %s117, %s120
      %p126 = scmp.eq.s32.totalorder %s13, 0
      %p127 = por %p125, %p126
      %p128 = scmp.ne.s32.totalorder %s117, %s120
      %p129 = scmp.eq.s32.totalorder %s18, 3
      %p130 = por %p128, %p129
      %p131 = scmp.ne.s32.totalorder %s120, %s121
      %p132 = scmp.eq.s32.totalorder %s18, 0
      %p133 = por %p131, %p132
      %p134 = scmp.ne.s32.totalorder %s120, %s121
      %p135 = scmp.eq.s32.totalorder %s19, 3
      %p136 = por %p134, %p135
      %p138 = scmp.ne.s32.totalorder %s121, %s137
      %p139 = scmp.eq.s32.totalorder %s19, 0
      %p140 = por %p138, %p139
      %s141 = ssub.s32 %s20, %s32
      %s142 = ssub.s32 %s21, %s28
      %s143 = sor.u32 %s141, %s142
      %p144 = scmp.eq.s32.totalorder %s143, 0
      %s146 = sadd.s32 %s145, 1
      %s147 = scalar_select %p144, %s145, %s146
      %p150 = pneg %p144
      %p151 = scmp.eq.s32.totalorder %s13, 3
      %p152 = por %p150, %p151
      %p153 = scmp.ne.s32.totalorder %s145, %s148
      %p154 = scmp.eq.s32.totalorder %s13, 0
      %p155 = por %p153, %p154
      %p156 = scmp.ne.s32.totalorder %s145, %s148
      %p157 = scmp.eq.s32.totalorder %s18, 3
      %p158 = por %p156, %p157
      %p159 = scmp.ne.s32.totalorder %s148, %s149
      %p160 = scmp.eq.s32.totalorder %s18, 0
      %p161 = por %p159, %p160
      %p162 = scmp.ne.s32.totalorder %s148, %s149
      %p163 = scmp.eq.s32.totalorder %s19, 3
      %p164 = por %p162, %p163
      %p166 = scmp.ne.s32.totalorder %s149, %s165
      %p167 = scmp.eq.s32.totalorder %s19, 0
      %p168 = por %p166, %p167
      %p169 = scmp.le.s32.totalorder 1, %s13
      %p170 = scmp.lt.s32.totalorder %s13, 5
      %p171 = pnand %p169, %p170
      %p172 = pneg %p171
      // Predicated region
      $region9: #{tpu_custom_call.1} parent=5 // pred_check
        _
      $region10: #{tpu_custom_call.1} parent=5 // pred_check_branch
        %174 = sbr.rel (%p171) target = $region12
      $region11: #{tpu_custom_call.1} parent=5 // pred_region
        %s175 = ssub.s32 %s13, 1
      $region12: #{tpu_custom_call.1} parent=5 // pred_fallthru
        _
      %p176 = scmp.lt.s32.totalorder %s13, 4
      // Predicated region
      $region13: #{tpu_custom_call.1} parent=5 // pred_check
        %p177 = pneg %p176
      $region14: #{tpu_custom_call.1} parent=5 // pred_check_branch
        %179 = sbr.rel (%p177) target = $region16
      $region15: #{tpu_custom_call.1} parent=5 // pred_region
        // Predicated region
        $region17: #{tpu_custom_call.1} parent=15 // pred_check
          %p180 = pneg %p47
        $region18: #{tpu_custom_call.1} parent=15 // pred_check_branch
          %182 = sbr.rel (%p180) target = $region20
        $region19: #{tpu_custom_call.1} parent=15 // pred_region
          %s183 = smul.u32 16, %s21
          %p184 = scmp.lt.s32.totalorder %s20, 1
          %s185 = scalar_select %p184, %s20, 1
          %p186 = scmp.lt.s32.totalorder %s183, 31
          %s187 = scalar_select %p186, %s183, 31
          %s188 = smul.addr %s185, 32
          %s189 = sadd.s32 %s187, %s188
          %s190 = smul.addr %s189, 4
          %s191 = scalar_lea.vmem %s0, %s190
          %s192 = smul.u32 16, %s21
        $region20: #{tpu_custom_call.1} parent=15 // pred_fallthru
          _
        // Predicated region
        $region21: #{tpu_custom_call.1} parent=15 // pred_check
          %p193 = pneg %p73
        $region22: #{tpu_custom_call.1} parent=15 // pred_check_branch
          %195 = sbr.rel (%p193) target = $region24
        $region23: #{tpu_custom_call.1} parent=15 // pred_region
          %p196 = scmp.lt.s32.totalorder %s20, 1
          %s197 = scalar_select %p196, %s20, 1
          %s198 = smul.addr %s197, 32
          %s199 = smul.addr %s198, 4
          %s200 = scalar_lea.vmem %s1, %s199
        $region24: #{tpu_custom_call.1} parent=15 // pred_fallthru
          _
        // Predicated region
        $region25: #{tpu_custom_call.1} parent=15 // pred_check
          %p201 = pneg %p99
        $region26: #{tpu_custom_call.1} parent=15 // pred_check_branch
          %203 = sbr.rel (%p201) target = $region28
        $region27: #{tpu_custom_call.1} parent=15 // pred_region
          %p204 = scmp.lt.s32.totalorder %s20, 1
          %s205 = scalar_select %p204, %s20, 1
          %s206 = smul.addr %s205, 2
          %s207 = smul.addr %s206, 2
          %s208 = scalar_lea.vmem %s2, %s207
        $region28: #{tpu_custom_call.1} parent=15 // pred_fallthru
          _
        // Predicated region
        $region29: #{tpu_custom_call.1} parent=15 // pred_check
          %p209 = pneg %p127
        $region30: #{tpu_custom_call.1} parent=15 // pred_check_branch
          %211 = sbr.rel (%p209) target = $region32
        $region31: #{tpu_custom_call.1} parent=15 // pred_region
          %p212 = scmp.lt.s32.totalorder %s20, 1
          %s213 = scalar_select %p212, %s20, 1
          %p214 = scmp.lt.s32.totalorder %s21, 1
          %s215 = scalar_select %p214, %s21, 1
          %s216 = smul.addr %s213, 2
          %s217 = sadd.s32 %s215, %s216
          %s218 = smul.addr %s217, 4
          %s219 = scalar_lea.vmem %s3, %s218
        $region32: #{tpu_custom_call.1} parent=15 // pred_fallthru
          _
      $region16: #{tpu_custom_call.1} parent=5 // pred_fallthru
        _
      %p220 = scmp.le.s32.totalorder 1, %s13
      %p221 = scmp.lt.s32.totalorder %s13, 5
      %p222 = pnand %p220, %p221
      %p223 = pneg %p222
      // Predicated region
      $region33: #{tpu_custom_call.1} parent=5 // pred_check
        _
      $region34: #{tpu_custom_call.1} parent=5 // pred_check_branch
        %225 = sbr.rel (%p222) target = $region36
      $region35: #{tpu_custom_call.1} parent=5 // pred_region
        %s226 = ssub.s32 %s13, 1
        %s227 = smul.u32 16, %s23
        %p228 = scmp.lt.s32.totalorder %s22, 1
        %s229 = scalar_select %p228, %s22, 1
        %p230 = scmp.lt.s32.totalorder %s227, 31
        %s231 = scalar_select %p230, %s227, 31
        %s232 = smul.addr %s229, 32
        %s233 = sadd.s32 %s231, %s232
        %s234 = smul.addr %s233, 4
        %s235 = scalar_lea.vmem %s0, %s234
        %p236 = pneg %p53
        %p237 = pneg %p50
        %p238 = scmp.lt.s32.totalorder %s22, 1
        %s239 = scalar_select %p238, %s22, 1
        %s240 = smul.addr %s239, 32
        %s241 = smul.addr %s240, 4
        %s242 = scalar_lea.vmem %s1, %s241
        %p243 = pneg %p79
        %p244 = pneg %p76
        %p245 = scmp.lt.s32.totalorder %s22, 1
        %s246 = scalar_select %p245, %s22, 1
        %s247 = smul.addr %s246, 2
        %s248 = smul.addr %s247, 2
        %s249 = scalar_lea.vmem %s2, %s248
        %p250 = pneg %p105
        %p251 = pneg %p102
        %p252 = scmp.lt.s32.totalorder %s22, 1
        %s253 = scalar_select %p252, %s22, 1
        %p254 = scmp.lt.s32.totalorder %s23, 1
        %s255 = scalar_select %p254, %s23, 1
        %s256 = smul.addr %s253, 2
        %s257 = sadd.s32 %s255, %s256
        %s258 = smul.addr %s257, 4
        %s259 = scalar_lea.vmem %s3, %s258
        %p260 = pneg %p133
        %p261 = pneg %p130
        %p262 = pneg %p161
        %p263 = pneg %p158
        %s264 = sand.u32 %s148, 1
        %s265 = scalar_lea.sflag [#allocation3], %s264
        %s266 = sand.u32 %s148, 1
        %s267 = smul.addr %s266, 4
        %s268 = scalar_lea.vmem [#allocation2], %s267
        %s269 = smul.u32 16, %s23
        %p270 = scmp.lt.s32.totalorder %s22, 1
        %s271 = scalar_select %p270, %s22, 1
        %p272 = scmp.lt.s32.totalorder %s269, 31
        %s273 = scalar_select %p272, %s269, 31
        %s274 = smul.addr %s271, 32
        %s275 = sadd.s32 %s273, %s274
        %s276 = smul.addr %s275, 4
        %s277 = scalar_lea.vmem %s0, %s276
        %s278 = smul.u32 16, %s23
        %p279 = scmp.lt.s32.totalorder %s22, 1
        %s280 = scalar_select %p279, %s22, 1
        %s281 = smul.addr %s280, 32
        %s282 = smul.addr %s281, 4
        %s283 = scalar_lea.vmem %s1, %s282
        %p284 = scmp.lt.s32.totalorder %s22, 1
        %s285 = scalar_select %p284, %s22, 1
        %s286 = smul.addr %s285, 2
        %s287 = smul.addr %s286, 2
        %s288 = scalar_lea.vmem %s2, %s287
        %p289 = scmp.lt.s32.totalorder %s22, 1
        %s290 = scalar_select %p289, %s22, 1
        %p291 = scmp.lt.s32.totalorder %s23, 1
        %s292 = scalar_select %p291, %s23, 1
        %s293 = smul.addr %s290, 2
        %s294 = sadd.s32 %s292, %s293
        %s295 = smul.addr %s294, 4
        %s296 = scalar_lea.vmem %s3, %s295
        %v298 = vld [vmem:[%s283] sm:$0xf]
        %v299 = vld [vmem:[%s283 + $0x4] sm:$0xf]
        %v300 = vld [vmem:[%s283 + $0x8] sm:$0xf]
        %v301 = vld [vmem:[%s283 + $0xc] sm:$0xf]
        %v302 = vld [vmem:[%s283 + $0x10] sm:$0xf]
        %v303 = vld [vmem:[%s283 + $0x14] sm:$0xf]
        %v304 = vld [vmem:[%s283 + $0x18] sm:$0xf]
        %v305 = vld [vmem:[%s283 + $0x1c] sm:$0xf]
        %v306 = vld [vmem:[%s283 + $0x20] sm:$0xf]
        %v307 = vld [vmem:[%s283 + $0x24] sm:$0xf]
        %v308 = vld [vmem:[%s283 + $0x28] sm:$0xf]
        %v309 = vld [vmem:[%s283 + $0x2c] sm:$0xf]
        %v310 = vld [vmem:[%s283 + $0x30] sm:$0xf]
        %v311 = vld [vmem:[%s283 + $0x34] sm:$0xf]
        %v312 = vld [vmem:[%s283 + $0x38] sm:$0xf]
        %v313 = vld [vmem:[%s283 + $0x3c] sm:$0xf]
        %v314 = vld [vmem:[%s283 + $0x40] sm:$0xf]
        %v315 = vld [vmem:[%s283 + $0x44] sm:$0xf]
        %v316 = vld [vmem:[%s283 + $0x48] sm:$0xf]
        %v317 = vld [vmem:[%s283 + $0x4c] sm:$0xf]
        %v318 = vld [vmem:[%s283 + $0x50] sm:$0xf]
        %v319 = vld [vmem:[%s283 + $0x54] sm:$0xf]
        %v320 = vld [vmem:[%s283 + $0x58] sm:$0xf]
        %v321 = vld [vmem:[%s283 + $0x5c] sm:$0xf]
        %v322 = vld [vmem:[%s283 + $0x60] sm:$0xf]
        %v323 = vld [vmem:[%s283 + $0x64] sm:$0xf]
        %v324 = vld [vmem:[%s283 + $0x68] sm:$0xf]
        %v325 = vld [vmem:[%s283 + $0x6c] sm:$0xf]
        %v326 = vld [vmem:[%s283 + $0x70] sm:$0xf]
        %v327 = vld [vmem:[%s283 + $0x74] sm:$0xf]
        %v328 = vld [vmem:[%s283 + $0x78] sm:$0xf]
        %v329 = vld [vmem:[%s283 + $0x7c] sm:$0xf]
        %v330 = vld [vmem:[%s277] sm:$0xf]
        %v331 = vld [vmem:[%s277 + $0x4] sm:$0xf]
        %v332 = vld [vmem:[%s277 + $0x8] sm:$0xf]
        %v333 = vld [vmem:[%s277 + $0xc] sm:$0xf]
        %v334 = vld [vmem:[%s277 + $0x10] sm:$0xf]
        %v335 = vld [vmem:[%s277 + $0x14] sm:$0xf]
        %v336 = vld [vmem:[%s277 + $0x18] sm:$0xf]
        %v337 = vld [vmem:[%s277 + $0x1c] sm:$0xf]
        %v338 = vld [vmem:[%s277 + $0x20] sm:$0xf]
        %v339 = vld [vmem:[%s277 + $0x24] sm:$0xf]
        %v340 = vld [vmem:[%s277 + $0x28] sm:$0xf]
        %v341 = vld [vmem:[%s277 + $0x2c] sm:$0xf]
        %v342 = vld [vmem:[%s277 + $0x30] sm:$0xf]
        %v343 = vld [vmem:[%s277 + $0x34] sm:$0xf]
        %v344 = vld [vmem:[%s277 + $0x38] sm:$0xf]
        %v345 = vld [vmem:[%s277 + $0x3c] sm:$0xf]
        %v378 = vunpack.c.l.b16 %v298
        %v379 = vunpack.c.l.b16 %v299
        %v380 = vunpack.c.l.b16 %v300
        %v381 = vunpack.c.l.b16 %v301
        %v382 = vunpack.c.l.b16 %v302
        %v383 = vunpack.c.l.b16 %v303
        %v384 = vunpack.c.l.b16 %v304
        %v385 = vunpack.c.l.b16 %v305
        %v386 = vunpack.c.l.b16 %v306
        %v387 = vunpack.c.l.b16 %v307
        %v388 = vunpack.c.l.b16 %v308
        %v389 = vunpack.c.l.b16 %v309
        %v390 = vunpack.c.l.b16 %v310
        %v391 = vunpack.c.l.b16 %v311
        %v392 = vunpack.c.l.b16 %v312
        %v393 = vunpack.c.l.b16 %v313
        %v394 = vunpack.c.l.b16 %v314
        %v395 = vunpack.c.l.b16 %v315
        %v396 = vunpack.c.l.b16 %v316
        %v397 = vunpack.c.l.b16 %v317
        %v398 = vunpack.c.l.b16 %v318
        %v399 = vunpack.c.l.b16 %v319
        %v400 = vunpack.c.l.b16 %v320
        %v401 = vunpack.c.l.b16 %v321
        %v402 = vunpack.c.l.b16 %v322
        %v403 = vunpack.c.l.b16 %v323
        %v404 = vunpack.c.l.b16 %v324
        %v405 = vunpack.c.l.b16 %v325
        %v406 = vunpack.c.l.b16 %v326
        %v407 = vunpack.c.l.b16 %v327
        %v408 = vunpack.c.l.b16 %v328
        %v409 = vunpack.c.l.b16 %v329
        %v410 = vpack.c.b16 %v379, %v378
        %v411 = vpack.c.b16 %v381, %v380
        %v412 = vpack.c.b16 %v383, %v382
        %v413 = vpack.c.b16 %v385, %v384
        %v414 = vpack.c.b16 %v387, %v386
        %v415 = vpack.c.b16 %v389, %v388
        %v416 = vpack.c.b16 %v391, %v390
        %v417 = vpack.c.b16 %v393, %v392
        %v418 = vpack.c.b16 %v395, %v394
        %v419 = vpack.c.b16 %v397, %v396
        %v420 = vpack.c.b16 %v399, %v398
        %v421 = vpack.c.b16 %v401, %v400
        %v422 = vpack.c.b16 %v403, %v402
        %v423 = vpack.c.b16 %v405, %v404
        %v424 = vpack.c.b16 %v407, %v406
        %v425 = vpack.c.b16 %v409, %v408
        %v442 = vunpack.c.l.b16 %v330
        %v443 = vunpack.c.l.b16 %v331
        %v444 = vunpack.c.l.b16 %v332
        %v445 = vunpack.c.l.b16 %v333
        %v446 = vunpack.c.l.b16 %v334
        %v447 = vunpack.c.l.b16 %v335
        %v448 = vunpack.c.l.b16 %v336
        %v449 = vunpack.c.l.b16 %v337
        %v450 = vunpack.c.l.b16 %v338
        %v451 = vunpack.c.l.b16 %v339
        %v452 = vunpack.c.l.b16 %v340
        %v453 = vunpack.c.l.b16 %v341
        %v454 = vunpack.c.l.b16 %v342
        %v455 = vunpack.c.l.b16 %v343
        %v456 = vunpack.c.l.b16 %v344
        %v457 = vunpack.c.l.b16 %v345
        %v458 = vpack.c.b16 %v443, %v442
        %v459 = vpack.c.b16 %v445, %v444
        %v460 = vpack.c.b16 %v447, %v446
        %v461 = vpack.c.b16 %v449, %v448
        %v462 = vpack.c.b16 %v451, %v450
        %v463 = vpack.c.b16 %v453, %v452
        %v464 = vpack.c.b16 %v455, %v454
        %v465 = vpack.c.b16 %v457, %v456
        %vm466 = vcmask 31744
        %v468 = vsel %vm466, %v410, 0
        %v471 = vsel %vm466, %v411, 0
        %v474 = vsel %vm466, %v412, 0
        %v477 = vsel %vm466, %v413, 0
        %v480 = vsel %vm466, %v414, 0
        %v483 = vsel %vm466, %v415, 0
        %v486 = vsel %vm466, %v416, 0
        %v489 = vsel %vm466, %v417, 0
        %v492 = vsel %vm466, %v418, 0
        %v495 = vsel %vm466, %v419, 0
        %v498 = vsel %vm466, %v420, 0
        %v501 = vsel %vm466, %v421, 0
        %v504 = vsel %vm466, %v422, 0
        %v507 = vsel %vm466, %v423, 0
        %v510 = vsel %vm466, %v424, 0
        %v513 = vsel %vm466, %v425, 0
        %v516 = vsel %vm466, %v458, 0
        %v519 = vsel %vm466, %v459, 0
        %v522 = vsel %vm466, %v460, 0
        %v525 = vsel %vm466, %v461, 0
        %v528 = vsel %vm466, %v462, 0
        %v531 = vsel %vm466, %v463, 0
        %v534 = vsel %vm466, %v464, 0
        %v537 = vsel %vm466, %v465, 0
        %539 = vmatprep.subr.bf16.mxu0 0
        %540 = vmatpush1.bf16.xpose.msra.mxu0 %v516
        %541 = vmatprep.subr.bf16.mxu0 0
        %542 = vmatpush1.bf16.xpose.msra.mxu0 %v519
        %543 = vmatprep.subr.bf16.mxu0 0
        %544 = vmatpush1.bf16.xpose.msra.mxu0 %v522
        %545 = vmatprep.subr.bf16.mxu0 0
        %546 = vmatpush1.bf16.xpose.msra.mxu0 %v525
        %547 = vmatprep.subr.bf16.mxu0 0
        %548 = vmatpush1.bf16.xpose.msra.mxu0 %v528
        %549 = vmatprep.subr.bf16.mxu0 0
        %550 = vmatpush1.bf16.xpose.msra.mxu0 %v531
        %551 = vmatprep.subr.bf16.mxu0 0
        %552 = vmatpush1.bf16.xpose.msra.mxu0 %v534
        %553 = vmatprep.subr.bf16.mxu0 0
        %554 = vmatpush1.bf16.xpose.msra.mxu0 %v537
        %555 = vmatprep.subr.bf16.mxu0 0
        %556 = vmatpush1.bf16.xpose.msra.mxu0 0
        %557 = vmatprep.subr.bf16.mxu0 0
        %558 = vmatpush1.bf16.xpose.msra.mxu0 0
        %559 = vmatprep.subr.bf16.mxu0 0
        %560 = vmatpush1.bf16.xpose.msra.mxu0 0
        %561 = vmatprep.subr.bf16.mxu0 0
        %562 = vmatpush1.bf16.xpose.msra.mxu0 0
        %563 = vmatprep.subr.bf16.mxu0 0
        %564 = vmatpush1.bf16.xpose.msra.mxu0 0
        %565 = vmatprep.subr.bf16.mxu0 0
        %566 = vmatpush1.bf16.xpose.msra.mxu0 0
        %567 = vmatprep.subr.bf16.mxu0 0
        %568 = vmatpush1.bf16.xpose.msra.mxu0 0
        %569 = vmatprep.subr.bf16.mxu0 0
        %570 = vmatpush1.bf16.xpose.msra.mxu0 0
        %571 = vmatprep.mubr.bf16.mxu0 0
        %572 = vmatmul.mubr.bf16.gmra.mrb[0].mxu0 %v468
        %v573 = vpop.f32.mrb[0].mxu0
        %v574 = vadd.f32 0.0, %v573
        %v575 = vpop.f32.mrb[0].mxu0
        %v576 = vpop.f32.mrb[0].mxu0
        %v577 = vadd.f32 0.0, %v576
        %v578 = vpop.f32.mrb[0].mxu0
        %579 = vmatprep.mubr.bf16.mxu0 0
        %580 = vmatmul.mubr.bf16.gmra.mrb[0].mxu0 %v471
        %v581 = vpop.f32.mrb[0].mxu0
        %v582 = vadd.f32 0.0, %v581
        %v583 = vpop.f32.mrb[0].mxu0
        %v584 = vpop.f32.mrb[0].mxu0
        %v585 = vadd.f32 0.0, %v584
        %v586 = vpop.f32.mrb[0].mxu0
        %587 = vmatprep.mubr.bf16.mxu0 0
        %588 = vmatmul.mubr.bf16.gmra.mrb[0].mxu0 %v474
        %v589 = vpop.f32.mrb[0].mxu0
        %v590 = vadd.f32 0.0, %v589
        %v591 = vpop.f32.mrb[0].mxu0
        %v592 = vpop.f32.mrb[0].mxu0
        %v593 = vadd.f32 0.0, %v592
        %v594 = vpop.f32.mrb[0].mxu0
        %595 = vmatprep.mubr.bf16.mxu0 0
        %596 = vmatmul.mubr.bf16.gmra.mrb[0].mxu0 %v477
        %v597 = vpop.f32.mrb[0].mxu0
        %v598 = vadd.f32 0.0, %v597
        %v599 = vpop.f32.mrb[0].mxu0
        %v600 = vpop.f32.mrb[0].mxu0
        %v601 = vadd.f32 0.0, %v600
        %v602 = vpop.f32.mrb[0].mxu0
        %603 = vmatprep.mubr.bf16.mxu0 0
        %604 = vmatmul.mubr.bf16.gmra.mrb[0].mxu0 %v480
        %v605 = vpop.f32.mrb[0].mxu0
        %v606 = vadd.f32 0.0, %v605
        %v607 = vpop.f32.mrb[0].mxu0
        %v608 = vpop.f32.mrb[0].mxu0
        %v609 = vadd.f32 0.0, %v608
        %v610 = vpop.f32.mrb[0].mxu0
        %611 = vmatprep.mubr.bf16.mxu0 0
        %612 = vmatmul.mubr.bf16.gmra.mrb[0].mxu0 %v483
        %v613 = vpop.f32.mrb[0].mxu0
        %v614 = vadd.f32 0.0, %v613
        %v615 = vpop.f32.mrb[0].mxu0
        %v616 = vpop.f32.mrb[0].mxu0
        %v617 = vadd.f32 0.0, %v616
        %v618 = vpop.f32.mrb[0].mxu0
        %619 = vmatprep.mubr.bf16.mxu0 0
        %620 = vmatmul.mubr.bf16.gmra.mrb[0].mxu0 %v486
        %v621 = vpop.f32.mrb[0].mxu0
        %v622 = vadd.f32 0.0, %v621
        %v623 = vpop.f32.mrb[0].mxu0
        %v624 = vpop.f32.mrb[0].mxu0
        %v625 = vadd.f32 0.0, %v624
        %v626 = vpop.f32.mrb[0].mxu0
        %627 = vmatprep.mubr.bf16.mxu0 0
        %628 = vmatmul.mubr.bf16.gmra.mrb[0].mxu0 %v489
        %v629 = vpop.f32.mrb[0].mxu0
        %v630 = vadd.f32 0.0, %v629
        %v631 = vpop.f32.mrb[0].mxu0
        %v632 = vpop.f32.mrb[0].mxu0
        %v633 = vadd.f32 0.0, %v632
        %v634 = vpop.f32.mrb[0].mxu0
        %635 = vmatprep.mubr.bf16.mxu0 0
        %636 = vmatmul.mubr.bf16.gmra.mrb[0].mxu0 %v492
        %v637 = vpop.f32.mrb[0].mxu0
        %v638 = vadd.f32 0.0, %v637
        %v639 = vpop.f32.mrb[0].mxu0
        %v640 = vpop.f32.mrb[0].mxu0
        %v641 = vadd.f32 0.0, %v640
        %v642 = vpop.f32.mrb[0].mxu0
        %643 = vmatprep.mubr.bf16.mxu0 0
        %644 = vmatmul.mubr.bf16.gmra.mrb[0].mxu0 %v495
        %v645 = vpop.f32.mrb[0].mxu0
        %v646 = vadd.f32 0.0, %v645
        %v647 = vpop.f32.mrb[0].mxu0
        %v648 = vpop.f32.mrb[0].mxu0
        %v649 = vadd.f32 0.0, %v648
        %v650 = vpop.f32.mrb[0].mxu0
        %651 = vmatprep.mubr.bf16.mxu0 0
        %652 = vmatmul.mubr.bf16.gmra.mrb[0].mxu0 %v498
        %v653 = vpop.f32.mrb[0].mxu0
        %v654 = vadd.f32 0.0, %v653
        %v655 = vpop.f32.mrb[0].mxu0
        %v656 = vpop.f32.mrb[0].mxu0
        %v657 = vadd.f32 0.0, %v656
        %v658 = vpop.f32.mrb[0].mxu0
        %659 = vmatprep.mubr.bf16.mxu0 0
        %660 = vmatmul.mubr.bf16.gmra.mrb[0].mxu0 %v501
        %v661 = vpop.f32.mrb[0].mxu0
        %v662 = vadd.f32 0.0, %v661
        %v663 = vpop.f32.mrb[0].mxu0
        %v664 = vpop.f32.mrb[0].mxu0
        %v665 = vadd.f32 0.0, %v664
        %v666 = vpop.f32.mrb[0].mxu0
        %667 = vmatprep.mubr.bf16.mxu0 0
        %668 = vmatmul.mubr.bf16.gmra.mrb[0].mxu0 %v504
        %v669 = vpop.f32.mrb[0].mxu0
        %v670 = vadd.f32 0.0, %v669
        %v671 = vpop.f32.mrb[0].mxu0
        %v672 = vpop.f32.mrb[0].mxu0
        %v673 = vadd.f32 0.0, %v672
        %v674 = vpop.f32.mrb[0].mxu0
        %675 = vmatprep.mubr.bf16.mxu0 0
        %676 = vmatmul.mubr.bf16.gmra.mrb[0].mxu0 %v507
        %v677 = vpop.f32.mrb[0].mxu0
        %v678 = vadd.f32 0.0, %v677
        %v679 = vpop.f32.mrb[0].mxu0
        %v680 = vpop.f32.mrb[0].mxu0
        %v681 = vadd.f32 0.0, %v680
        %v682 = vpop.f32.mrb[0].mxu0
        %683 = vmatprep.mubr.bf16.mxu0 0
        %684 = vmatmul.mubr.bf16.gmra.mrb[0].mxu0 %v510
        %v685 = vpop.f32.mrb[0].mxu0
        %v686 = vadd.f32 0.0, %v685
        %v687 = vpop.f32.mrb[0].mxu0
        %v688 = vpop.f32.mrb[0].mxu0
        %v689 = vadd.f32 0.0, %v688
        %v690 = vpop.f32.mrb[0].mxu0
        %691 = vmatprep.mubr.bf16.mxu0 0
        %692 = vmatmul.mubr.bf16.gmra.mrb[0].mxu0 %v513
        %v693 = vpop.f32.mrb[0].mxu0
        %v694 = vadd.f32 0.0, %v693
        %v695 = vpop.f32.mrb[0].mxu0
        %v696 = vpop.f32.mrb[0].mxu0
        %v697 = vadd.f32 0.0, %v696
        %v698 = vpop.f32.mrb[0].mxu0
        %699 = vdwg.mxu0
        %v700 = vmax.f32 %v574, %v590
        %v701 = vmax.f32 %v577, %v593
        %v702 = vmax.f32 %v582, %v598
        %v703 = vmax.f32 %v585, %v601
        %v704 = vmax.f32 %v700, %v606
        %v705 = vmax.f32 %v701, %v609
        %v706 = vmax.f32 %v702, %v614
        %v707 = vmax.f32 %v703, %v617
        %v708 = vmax.f32 %v704, %v622
        %v709 = vmax.f32 %v705, %v625
        %v710 = vmax.f32 %v706, %v630
        %v711 = vmax.f32 %v707, %v633
        %v712 = vmax.f32 %v708, %v638
        %v713 = vmax.f32 %v709, %v641
        %v714 = vmax.f32 %v710, %v646
        %v715 = vmax.f32 %v711, %v649
        %v716 = vmax.f32 %v712, %v654
        %v717 = vmax.f32 %v713, %v657
        %v718 = vmax.f32 %v714, %v662
        %v719 = vmax.f32 %v715, %v665
        %v720 = vmax.f32 %v716, %v670
        %v721 = vmax.f32 %v717, %v673
        %v722 = vmax.f32 %v718, %v678
        %v723 = vmax.f32 %v719, %v681
        %v724 = vmax.f32 %v720, %v686
        %v725 = vmax.f32 %v721, %v689
        %v726 = vmax.f32 %v722, %v694
        %v727 = vmax.f32 %v723, %v697
        %v728 = vmax.f32 %v724, %v725
        %v729 = vmax.f32 %v726, %v727
        %v730 = vmax.f32 %v728, %v729
        %v731 = vrot.slane %v730, 4
        %v732 = vmax.f32 %v730, %v731
        %v733 = vrot.slane %v732, 2
        %v734 = vmax.f32 %v732, %v733
        %v735 = vrot.slane %v734, 1
        %v736 = vmax.f32 %v734, %v735
        %v737 = vsub.f32 %v574, %v736
        %v738 = vsub.f32 %v577, %v736
        %v739 = vsub.f32 %v582, %v736
        %v740 = vsub.f32 %v585, %v736
        %v741 = vsub.f32 %v590, %v736
        %v742 = vsub.f32 %v593, %v736
        %v743 = vsub.f32 %v598, %v736
        %v744 = vsub.f32 %v601, %v736
        %v745 = vsub.f32 %v606, %v736
        %v746 = vsub.f32 %v609, %v736
        %v747 = vsub.f32 %v614, %v736
        %v748 = vsub.f32 %v617, %v736
        %v749 = vsub.f32 %v622, %v736
        %v750 = vsub.f32 %v625, %v736
        %v751 = vsub.f32 %v630, %v736
        %v752 = vsub.f32 %v633, %v736
        %v753 = vsub.f32 %v638, %v736
        %v754 = vsub.f32 %v641, %v736
        %v755 = vsub.f32 %v646, %v736
        %v756 = vsub.f32 %v649, %v736
        %v757 = vsub.f32 %v654, %v736
        %v758 = vsub.f32 %v657, %v736
        %v759 = vsub.f32 %v662, %v736
        %v760 = vsub.f32 %v665, %v736
        %v761 = vsub.f32 %v670, %v736
        %v762 = vsub.f32 %v673, %v736
        %v763 = vsub.f32 %v678, %v736
        %v764 = vsub.f32 %v681, %v736
        %v765 = vsub.f32 %v686, %v736
        %v766 = vsub.f32 %v689, %v736
        %v767 = vsub.f32 %v694, %v736
        %v768 = vsub.f32 %v697, %v736
        %v769 = vmul.f32 %v737, 1.442695
        %v770 = vpow.pop %v769
        %v771 = vmul.f32 %v738, 1.442695
        %v772 = vpow.pop %v771
        %v773 = vmul.f32 %v739, 1.442695
        %v774 = vpow.pop %v773
        %v775 = vmul.f32 %v740, 1.442695
        %v776 = vpow.pop %v775
        %v777 = vmul.f32 %v741, 1.442695
        %v778 = vpow.pop %v777
        %v779 = vmul.f32 %v742, 1.442695
        %v780 = vpow.pop %v779
        %v781 = vmul.f32 %v743, 1.442695
        %v782 = vpow.pop %v781
        %v783 = vmul.f32 %v744, 1.442695
        %v784 = vpow.pop %v783
        %v785 = vmul.f32 %v745, 1.442695
        %v786 = vpow.pop %v785
        %v787 = vmul.f32 %v746, 1.442695
        %v788 = vpow.pop %v787
        %v789 = vmul.f32 %v747, 1.442695
        %v790 = vpow.pop %v789
        %v791 = vmul.f32 %v748, 1.442695
        %v792 = vpow.pop %v791
        %v793 = vmul.f32 %v749, 1.442695
        %v794 = vpow.pop %v793
        %v795 = vmul.f32 %v750, 1.442695
        %v796 = vpow.pop %v795
        %v797 = vmul.f32 %v751, 1.442695
        %v798 = vpow.pop %v797
        %v799 = vmul.f32 %v752, 1.442695
        %v800 = vpow.pop %v799
        %v801 = vmul.f32 %v753, 1.442695
        %v802 = vpow.pop %v801
        %v803 = vmul.f32 %v754, 1.442695
        %v804 = vpow.pop %v803
        %v805 = vmul.f32 %v755, 1.442695
        %v806 = vpow.pop %v805
        %v807 = vmul.f32 %v756, 1.442695
        %v808 = vpow.pop %v807
        %v809 = vmul.f32 %v757, 1.442695
        %v810 = vpow.pop %v809
        %v811 = vmul.f32 %v758, 1.442695
        %v812 = vpow.pop %v811
        %v813 = vmul.f32 %v759, 1.442695
        %v814 = vpow.pop %v813
        %v815 = vmul.f32 %v760, 1.442695
        %v816 = vpow.pop %v815
        %v817 = vmul.f32 %v761, 1.442695
        %v818 = vpow.pop %v817
        %v819 = vmul.f32 %v762, 1.442695
        %v820 = vpow.pop %v819
        %v821 = vmul.f32 %v763, 1.442695
        %v822 = vpow.pop %v821
        %v823 = vmul.f32 %v764, 1.442695
        %v824 = vpow.pop %v823
        %v825 = vmul.f32 %v765, 1.442695
        %v826 = vpow.pop %v825
        %v827 = vmul.f32 %v766, 1.442695
        %v828 = vpow.pop %v827
        %v829 = vmul.f32 %v767, 1.442695
        %v830 = vpow.pop %v829
        %v831 = vmul.f32 %v768, 1.442695
        %v832 = vpow.pop %v831
        %v833 = vadd.f32 %v770, %v772
        %v834 = vadd.f32 %v833, %v774
        %v835 = vadd.f32 %v834, %v776
        %v836 = vadd.f32 %v835, %v778
        %v837 = vadd.f32 %v836, %v780
        %v838 = vadd.f32 %v837, %v782
        %v839 = vadd.f32 %v838, %v784
        %v840 = vadd.f32 %v839, %v786
        %v841 = vadd.f32 %v840, %v788
        %v842 = vadd.f32 %v841, %v790
        %v843 = vadd.f32 %v842, %v792
        %v844 = vadd.f32 %v843, %v794
        %v845 = vadd.f32 %v844, %v796
        %v846 = vadd.f32 %v845, %v798
        %v847 = vadd.f32 %v846, %v800
        %v848 = vadd.f32 %v847, %v802
        %v849 = vadd.f32 %v848, %v804
        %v850 = vadd.f32 %v849, %v806
        %v851 = vadd.f32 %v850, %v808
        %v852 = vadd.f32 %v851, %v810
        %v853 = vadd.f32 %v852, %v812
        %v854 = vadd.f32 %v853, %v814
        %v855 = vadd.f32 %v854, %v816
        %v856 = vadd.f32 %v855, %v818
        %v857 = vadd.f32 %v856, %v820
        %v858 = vadd.f32 %v857, %v822
        %v859 = vadd.f32 %v858, %v824
        %v860 = vadd.f32 %v859, %v826
        %v861 = vadd.f32 %v860, %v828
        %v862 = vadd.f32 %v861, %v830
        %v863 = vadd.f32 %v862, %v832
        %v864 = vrot.slane %v863, 4
        %v865 = vadd.f32 %v863, %v864
        %v866 = vrot.slane %v865, 2
        %v867 = vadd.f32 %v865, %v866
        %v868 = vrot.slane %v867, 1
        %v869 = vadd.f32 %v867, %v868
        %v870 = vld [vmem:[%s288] sm:$0xf]
        %v871 = vpack.c.bf16 %v772, %v770
        %v872 = vpack.c.bf16 %v776, %v774
        %v873 = vpack.c.bf16 %v780, %v778
        %v874 = vpack.c.bf16 %v784, %v782
        %v875 = vpack.c.bf16 %v788, %v786
        %v876 = vpack.c.bf16 %v792, %v790
        %v877 = vpack.c.bf16 %v796, %v794
        %v878 = vpack.c.bf16 %v800, %v798
        %v879 = vpack.c.bf16 %v804, %v802
        %v880 = vpack.c.bf16 %v808, %v806
        %v881 = vpack.c.bf16 %v812, %v810
        %v882 = vpack.c.bf16 %v816, %v814
        %v883 = vpack.c.bf16 %v820, %v818
        %v884 = vpack.c.bf16 %v824, %v822
        %v885 = vpack.c.bf16 %v828, %v826
        %v886 = vpack.c.bf16 %v832, %v830
        %v889 = vunpack.c.l.s4 1983009808
        %v890 = vunpack.c.0.s8 %v889
        %v891 = vlaneseq
        %v892 = vshrl.u32 %v891, 7
        %v893 = vsub.s32 %v890, %v892
        %v894 = vrot.slane %v870, %v893
        %v895 = vcombine.high %v894, %v894
        %898 = vmatprep.subr.bf16.mxu0 0
        %899 = vmatpush1.bf16.msra.mxu0 %v871
        %900 = vmatprep.subr.bf16.mxu0 0
        %901 = vmatpush1.bf16.msra.mxu0 %v872
        %902 = vmatprep.subr.bf16.mxu0 0
        %903 = vmatpush1.bf16.msra.mxu0 %v873
        %904 = vmatprep.subr.bf16.mxu0 0
        %905 = vmatpush1.bf16.msra.mxu0 %v874
        %906 = vmatprep.subr.bf16.mxu0 0
        %907 = vmatpush1.bf16.msra.mxu0 %v875
        %908 = vmatprep.subr.bf16.mxu0 0
        %909 = vmatpush1.bf16.msra.mxu0 %v876
        %910 = vmatprep.subr.bf16.mxu0 0
        %911 = vmatpush1.bf16.msra.mxu0 %v877
        %912 = vmatprep.subr.bf16.mxu0 0
        %913 = vmatpush1.bf16.msra.mxu0 %v878
        %914 = vmatprep.subr.bf16.mxu0 0
        %915 = vmatpush1.bf16.msra.mxu0 %v879
        %916 = vmatprep.subr.bf16.mxu0 0
        %917 = vmatpush1.bf16.msra.mxu0 %v880
        %918 = vmatprep.subr.bf16.mxu0 0
        %919 = vmatpush1.bf16.msra.mxu0 %v881
        %920 = vmatprep.subr.bf16.mxu0 0
        %921 = vmatpush1.bf16.msra.mxu0 %v882
        %922 = vmatprep.subr.bf16.mxu0 0
        %923 = vmatpush1.bf16.msra.mxu0 %v883
        %924 = vmatprep.subr.bf16.mxu0 0
        %925 = vmatpush1.bf16.msra.mxu0 %v884
        %926 = vmatprep.subr.bf16.mxu0 0
        %927 = vmatpush1.bf16.msra.mxu0 %v885
        %928 = vmatprep.subr.bf16.mxu0 0
        %929 = vmatpush1.bf16.msra.mxu0 %v886
        %930 = vmatprep.mubr.bf16.mxu0 %v895
        %931 = vmatmul.mubr.bf16.gmra.mrb[0].mxu0 %v894
        %v932 = vpop.f32.mrb[0].mxu0
        %v933 = vadd.f32 0.0, %v932
        %v934 = vpop.f32.mrb[0].mxu0
        %v935 = vpop.f32.mrb[0].mxu0
        %v936 = vpop.f32.mrb[0].mxu0
        %937 = vdwg.mxu0
        %v938 = vrcp.pop %v869
        %v939 = vmul.f32 %v933, %v938
        %v940 = vld [vmem:[%s296] sm:$0xf]
        %v941 = vadd.f32 %v939, %v940
        %942 = vst [vmem:[%s268] sm:$0xf] %v941
        %s943 = sand.u32 %s148, 1
        %s944 = scalar_lea.sflag [#allocation3], %s943
        %s945 = sand.u32 %s148, 1
        %s946 = smul.addr %s945, 4
        %s947 = scalar_lea.vmem [#allocation2], %s946
        // Predicated region
        $region37: #{tpu_custom_call.1} parent=35 // pred_check
          %p948 = pneg %p158
        $region38: #{tpu_custom_call.1} parent=35 // pred_check_branch
          %950 = sbr.rel (%p948) target = $region40
        $region39: #{tpu_custom_call.1} parent=35 // pred_region
          %s952 = ssub.s32 64, 64
          %953 = vsyncadd %s944, %s952
          %s954 = smul.addr %s22, 2
          %s955 = sadd.s32 %s23, %s954
          %s956 = smul.addr %s955, 64
          %s957 = scalar_lea.hbm %s4, %s956
          %s959 = sshll.u32 %s947, 4
          %s960 = int_to_ptr.vmem [resolvable:$true] %s959
          %962 = dma.vmem_to_hbm [thread:$0]  %s960, 64, %s957, %s944
        $region40: #{tpu_custom_call.1} parent=35 // pred_fallthru
          _
      $region36: #{tpu_custom_call.1} parent=5 // pred_fallthru
        _
      %p963 = scmp.le.s32.totalorder 2, %s13
      // Predicated region
      $region41: #{tpu_custom_call.1} parent=5 // pred_check
        %p964 = pneg %p963
      $region42: #{tpu_custom_call.1} parent=5 // pred_check_branch
        %966 = sbr.rel (%p964) target = $region44
      $region43: #{tpu_custom_call.1} parent=5 // pred_region
        %s967 = ssub.s32 %s13, 2
        // Predicated region
        $region45: #{tpu_custom_call.1} parent=43 // pred_check
          %p968 = pneg %p164
        $region46: #{tpu_custom_call.1} parent=43 // pred_check_branch
          %970 = sbr.rel (%p968) target = $region48
        $region47: #{tpu_custom_call.1} parent=43 // pred_region
          %s971 = sand.u32 %s149, 1
          %s972 = scalar_lea.sflag [#allocation3], %s971
          %s973 = sand.u32 %s149, 1
          %s974 = smul.addr %s973, 4
          %s975 = scalar_lea.vmem [#allocation2], %s974
          %976 = dma.done %s972, 64
        $region48: #{tpu_custom_call.1} parent=43 // pred_fallthru
          _
      $region44: #{tpu_custom_call.1} parent=5 // pred_fallthru
        _
    $region6: #{tpu_custom_call.1} parent=1 // loop_footer
      %s17 = sadd.s32 1, %s13
    $region7: #{tpu_custom_call.1} parent=1 // loop_footer_branch
      %12 = sbr.rel target = $region3
    $region8: #{tpu_custom_call.1} parent=1 // loop_exit
      _
    %977 = vsyncpa [#allocation3], 1
    %s978 = scalar_lea.sflag [#allocation3], 1
    %979 = vsyncpa %s978, 1

</llo_original>
